<compile_context>
chip_gen: v6e
topology: v6e:2x2x1
jax: 0.10.0
libtpu: 0.0.40
codegen_flags: <defaults>
</compile_context>

<pallas_src>
import functools

import jax
import jax.numpy as jnp
from jax.experimental import pallas as pl
from jax.experimental.pallas import tpu as pltpu


def _round_up(v, m):
    return ((v + m - 1) // m) * m


def _fused_gcn_kernel(a_ref, x_ref, w1_ref, b1_ref, w2_ref, b2_ref, d_ref,
                      o_ref, z_ref, acc_ref, *, tm, tk, a_resident):
    l = pl.program_id(0)          # layer: 0 or 1
    i = pl.program_id(1)          # output row tile
    k = pl.program_id(2)          # reduction (neighbor) tile
    nk = pl.num_programs(2)

    row_i = pl.multiple_of(i * tm, tm)
    row_k = pl.multiple_of(k * tk, tk)

    # ---- layer-0 Z1, distributed over k-tiles of the first row pass --------
    #      Z1[k-tile] = (d^-1/2 ⊙ X)[k-tile] @ W1     (bf16 x bf16 -> f32)
    @pl.when((l == 0) & (i == 0))
    def _():
        d_k = d_ref[pl.ds(row_k, tk), :]                          # (tk, 1) f32
        xs = (x_ref[...] * d_k).astype(jnp.bfloat16)              # (tk, Fin)
        z_ref[0, pl.ds(row_k, tk), :] = jnp.dot(
            xs, w1_ref[...], preferred_element_type=jnp.float32
        ).astype(z_ref.dtype)

    # ---- tiled aggregation: acc += A[i, k] @ Z_l[k] -------------------------
    @pl.when(k == 0)
    def _():
        acc_ref[...] = jnp.zeros_like(acc_ref)

    if a_resident:
        # A resident in VMEM as bf16: one HBM pass total for both layers.
        a_tile = a_ref[pl.ds(row_i, tm), pl.ds(row_k, tk)]
    else:
        # A streamed from HBM as int8 (halved bytes); cast on the VPU.
        a_tile = a_ref[...].astype(jnp.float32).astype(jnp.bfloat16)

    z_k = z_ref[l, pl.ds(row_k, tk), :]                           # (tk, F) bf16
    acc_ref[...] += jnp.dot(a_tile, z_k, preferred_element_type=jnp.float32)

    # ---- row-tile epilogue: row scale, bias, activation, route --------------
    @pl.when(k == nk - 1)
    def _():
        d_i = d_ref[pl.ds(row_i, tm), :]                          # (tm, 1) f32
        res = acc_ref[...] * d_i                                  # (tm, F) f32

        @pl.when(l == 0)
        def _():
            # h tile, then immediately fold the (row-local) layer-1 feature
            # transform:  Z2[row tile] = (d ⊙ h) @ W2.  h never hits HBM and
            # is never kept resident.
            h_tile = jnp.maximum(res + b1_ref[...], 0.0)
            z2 = jnp.dot((h_tile * d_i).astype(jnp.bfloat16), w2_ref[...],
                         preferred_element_type=jnp.float32)
            z_ref[1, pl.ds(row_i, tm), :] = z2.astype(z_ref.dtype)

        @pl.when(l == 1)
        def _():
            o_ref[...] = (res + b2_ref[...]).astype(o_ref.dtype)


def preprocess_graph(adj, *, tm=512, tk=1024, resident_max_nodes=2048):
    """One-time graph preprocessing (do NOT redo per forward call).

    Returns (a_padded, d_padded, geom) where geom holds the static kernel
    configuration (pass it to gcn_forward via functools.partial)."""
    assert tm % 128 == 0 and tk % 128 == 0
    assert (tm & (tm - 1)) == 0 and (tk & (tk - 1)) == 0, "tiles must be 2^k"

    n = adj.shape[0]
    n128 = _round_up(n, 128)
    while tm > n128:
        tm //= 2
    while tk > n128:
        tk //= 2
    # tm, tk are powers of two >= 128  ->  lcm(tm, tk) == max(tm, tk),
    # so n_pad is divisible by BOTH tiles (fixes the old divisibility bug).
    n_pad = _round_up(n, max(tm, tk))

    a_resident = n_pad <= resident_max_nodes
    a_dtype = jnp.bfloat16 if a_resident else jnp.int8   # 0/1 exact in both

    deg = jnp.sum(adj, axis=1)
    d_inv_sqrt = jnp.where(deg > 0, jax.lax.rsqrt(jnp.maximum(deg, 1e-12)), 0.0)

    a_p = jnp.zeros((n_pad, n_pad), a_dtype).at[:n, :n].set(adj.astype(a_dtype))
    d_p = jnp.zeros((n_pad, 1), jnp.float32).at[:n, 0].set(d_inv_sqrt)

    geom = dict(n=n, tm=tm, tk=tk, a_resident=bool(a_resident))
    return a_p, d_p, geom


def _vmem_limit_bytes(n_pad, fin_pad, f_pad, tm, tk, a_resident, a_buffers):
    b = 2 * n_pad * f_pad * 2                       # Z scratch (2, N, F) bf16
    b += tm * f_pad * 4                             # accumulator
    if a_resident:
        b += 2 * n_pad * n_pad * 2                  # resident A (bf16)
    else:
        b += a_buffers * tm * tk * 1                # streamed A tiles (int8)
    b += 2 * tk * fin_pad * 4                       # X k-tiles (f32)
    b += 2 * (fin_pad * f_pad + f_pad * f_pad) * 2  # W1, W2 (bf16)
    b += 2 * 2 * f_pad * 4                          # b1, b2
    b += 2 * n_pad * 4                              # d^-1/2
    b += 2 * tm * f_pad * 4                         # output tiles
    return int(min(max(int(b * 1.5) + (4 << 20), 24 << 20), 128 << 20))


def gcn_forward(a_p, d_p, x, params, *, n, tm, tk, a_resident, interpret=False):
    """Fused 2-layer GCN forward on a preprocessed graph (see preprocess_graph)."""
    n_pad = a_p.shape[0]
    in_feats = x.shape[1]
    h_feats = params["w1"].shape[1]
    num_classes = params["w2"].shape[1]

    fin_pad = _round_up(in_feats, 128)
    # Keep feature width at exactly 128 lanes (no over-padding): kernel is
    # HBM-bound, wider padding costs VMEM/traffic for zero speedup.
    f_pad = _round_up(max(h_feats, num_classes), 128)

    # ---- per-call operand padding (cheap: everything here is O(N*F), not N^2) ----
    x_p = jnp.zeros((n_pad, fin_pad), jnp.float32).at[:n, :in_feats].set(x)
    w1_p = jnp.zeros((fin_pad, f_pad), jnp.bfloat16).at[:in_feats, :h_feats].set(
        params["w1"].astype(jnp.bfloat16))
    b1_p = jnp.zeros((1, f_pad), jnp.float32).at[0, :h_feats].set(params["b1"])
    w2_p = jnp.zeros((f_pad, f_pad), jnp.bfloat16).at[:h_feats, :num_classes].set(
        params["w2"].astype(jnp.bfloat16))
    b2_p = jnp.zeros((1, f_pad), jnp.float32).at[0, :num_classes].set(params["b2"])

    grid = (2, n_pad // tm, n_pad // tk)

    # ---- A BlockSpec: resident (small graphs) or deep-buffered int8 stream ----
    if a_resident:
        a_spec = pl.BlockSpec((n_pad, n_pad), lambda l, i, k: (0, 0))
        a_buffers = 2
    else:
        a_map = lambda l, i, k: (i, k)
        try:
            a_spec = pl.BlockSpec((tm, tk), a_map, pipeline_mode=pl.Buffered(3))
            a_buffers = 3
        except (TypeError, AttributeError):
            a_spec = pl.BlockSpec((tm, tk), a_map)
            a_buffers = 2

    # X is only needed while computing Z1 (layer 0, first row pass); park on
    # block 0 otherwise so it is not re-streamed for every row tile.
    x_map = lambda l, i, k: (jnp.where((l == 0) & (i == 0), k, 0), 0)

    kernel = functools.partial(_fused_gcn_kernel, tm=tm, tk=tk,
                               a_resident=a_resident)

    out_pad = pl.pallas_call(
        kernel,
        out_shape=jax.ShapeDtypeStruct((n_pad, f_pad), jnp.float32),
        grid=grid,
        in_specs=[
            a_spec,                                                  # A
            pl.BlockSpec((tk, fin_pad), x_map),                      # X k-tiles
            pl.BlockSpec((fin_pad, f_pad), lambda l, i, k: (0, 0)),  # W1 (bf16)
            pl.BlockSpec((1, f_pad), lambda l, i, k: (0, 0)),        # b1
            pl.BlockSpec((f_pad, f_pad), lambda l, i, k: (0, 0)),    # W2 (bf16)
            pl.BlockSpec((1, f_pad), lambda l, i, k: (0, 0)),        # b2
            pl.BlockSpec((n_pad, 1), lambda l, i, k: (0, 0)),        # d^-1/2
        ],
        # Layer 0 parks on output block (0, 0) (never written there); layer 1
        # walks (0,0),(1,0),...  -> monotone, no block revisits.
        out_specs=pl.BlockSpec((tm, f_pad), lambda l, i, k: (l * i, 0)),
        scratch_shapes=[
            pltpu.VMEM((2, n_pad, f_pad), jnp.bfloat16),   # Z1 / Z2 (indexed by layer)
            pltpu.VMEM((tm, f_pad), jnp.float32),          # aggregation accumulator
        ],
        compiler_params=pltpu.CompilerParams(
            # Layers/rows communicate through persistent VMEM scratch -> must
            # stay "arbitrary" in this fused form (see TODO for v7x split).
            dimension_semantics=("arbitrary", "arbitrary", "arbitrary"),
            vmem_limit_bytes=_vmem_limit_bytes(n_pad, fin_pad, f_pad, tm, tk,
                                               a_resident, a_buffers)),
        interpret=interpret,
    )(a_p, x_p, w1_p, b1_p, w2_p, b2_p, d_p)

    return out_pad[:n, :num_classes]


def _gcn_reference(adj, x, params):
    """Pure-JAX reference (same math, f32 throughout) for a tolerance check."""
    deg = jnp.sum(adj, axis=1)
    d = jnp.where(deg > 0, jax.lax.rsqrt(jnp.maximum(deg, 1e-12)), 0.0)
    a_hat = adj * d[:, None] * d[None, :]
    h = jnp.maximum(a_hat @ (x @ params["w1"]) + params["b1"], 0.0)
    return a_hat @ (h @ params["w2"]) + params["b2"]


def init_params(key, in_feats, h_feats, num_classes):
    k1, k2 = jax.random.split(key)

    def glorot(k, fan_in, fan_out):
        limit = jnp.sqrt(6.0 / (fan_in + fan_out))
        return jax.random.uniform(k, (fan_in, fan_out), jnp.float32, -limit, limit)

    return {
        "w1": glorot(k1, in_feats, h_feats),
        "b1": jnp.zeros((h_feats,), jnp.float32),
        "w2": glorot(k2, h_feats, num_classes),
        "b2": jnp.zeros((num_classes,), jnp.float32),
    }


if __name__ == "__main__":
    N = 16          # number of nodes
    IN_FEATS = 8
    H_FEATS = 32
    NUM_CLASSES = 4

    key = jax.random.PRNGKey(0)
    k_graph, k_feat, k_param = jax.random.split(key, 3)

    # Deterministic random undirected graph (symmetric 0/1 adjacency, no self
    # loops — matching DGL GraphConv's default of not adding them).
    upper = (jax.random.uniform(k_graph, (N, N)) < 0.3).astype(jnp.float32)
    upper = jnp.triu(upper, k=1)
    adj = upper + upper.T

    x = jax.random.normal(k_feat, (N, IN_FEATS), jnp.float32)
    params = init_params(k_param, IN_FEATS, H_FEATS, NUM_CLASSES)

    # Graph preprocessing happens once, outside the per-call path.
    a_p, d_p, geom = preprocess_graph(adj)
    fwd = jax.jit(functools.partial(gcn_forward, **geom))

    out = fwd(a_p, d_p, x, params)
    jax.block_until_ready(out)

    assert out.shape == (N, NUM_CLASSES)
    assert out.dtype == jnp.float32

    ref = _gcn_reference(adj, x, params)
    assert jnp.allclose(out, ref, atol=5e-2, rtol=5e-2), float(
        jnp.max(jnp.abs(out - ref)))

    print("KERNEL_OK")
</pallas_src>

<mosaic_0001>
module attributes {stable_mosaic.version = 11 : i64} {
  func.func @_fused_gcn_kernel(%arg0: i32, %arg1: i32, %arg2: i32, %arg3: memref<128x128xbf16, #tpu.memory_space<vmem>>, %arg4: memref<128x128xf32, #tpu.memory_space<vmem>>, %arg5: memref<128x128xbf16, #tpu.memory_space<vmem>>, %arg6: memref<1x128xf32, #tpu.memory_space<vmem>>, %arg7: memref<128x128xbf16, #tpu.memory_space<vmem>>, %arg8: memref<1x128xf32, #tpu.memory_space<vmem>>, %arg9: memref<128x1xf32, #tpu.memory_space<vmem>>, %arg10: memref<128x128xf32, #tpu.memory_space<vmem>>, %arg11: memref<2x128x128xbf16, #tpu.memory_space<vmem>>, %arg12: memref<128x128xf32, #tpu.memory_space<vmem>>) attributes {dimension_semantics = [#tpu.dimension_semantics<arbitrary>, #tpu.dimension_semantics<arbitrary>, #tpu.dimension_semantics<arbitrary>], iteration_bounds = array<i64: 2, 1, 1>, scalar_prefetch = 0 : i64, scratch_operands = 2 : i64, tpu.core_type = #tpu.core_type<tc>, window_params = [{pipeline_mode = #tpu.pipeline_mode<synchronous>, transform_indices = @transform_0, window_bounds = array<i64: 128, 128>}, {transform_indices = @transform_1, window_bounds = array<i64: 128, 128>}, {pipeline_mode = #tpu.pipeline_mode<synchronous>, transform_indices = @transform_2, window_bounds = array<i64: 128, 128>}, {pipeline_mode = #tpu.pipeline_mode<synchronous>, transform_indices = @transform_3, window_bounds = array<i64: 1, 128>}, {pipeline_mode = #tpu.pipeline_mode<synchronous>, transform_indices = @transform_4, window_bounds = array<i64: 128, 128>}, {pipeline_mode = #tpu.pipeline_mode<synchronous>, transform_indices = @transform_5, window_bounds = array<i64: 1, 128>}, {pipeline_mode = #tpu.pipeline_mode<synchronous>, transform_indices = @transform_6, window_bounds = array<i64: 128, 1>}, {transform_indices = @transform_7, window_bounds = array<i64: 128, 128>}]} {
    %c128_i32 = arith.constant 128 : i32
    %0 = arith.muli %arg1, %c128_i32 : i32
    %1 = tpu.assume_multiple %0, 128 : i32
    %c128_i32_0 = arith.constant 128 : i32
    %2 = arith.muli %arg2, %c128_i32_0 : i32
    %3 = tpu.assume_multiple %2, 128 : i32
    %c0_i32 = arith.constant 0 : i32
    %4 = arith.cmpi eq, %arg0, %c0_i32 : i32
    %c0_i32_1 = arith.constant 0 : i32
    %5 = arith.cmpi eq, %arg1, %c0_i32_1 : i32
    %6 = arith.andi %4, %5 : i1
    %7 = arith.extui %6 : i1 to i32
    %c0_i32_2 = arith.constant 0 : i32
    %8 = arith.cmpi ne, %7, %c0_i32_2 : i32
    scf.if %8 {
      %26 = arith.index_cast %3 : i32 to index
      %c0_11 = arith.constant 0 : index
      %27 = vector.load %arg9[%26, %c0_11] : memref<128x1xf32, #tpu.memory_space<vmem>>, vector<128x1xf32>
      %c0_12 = arith.constant 0 : index
      %c0_13 = arith.constant 0 : index
      %28 = vector.load %arg4[%c0_12, %c0_13] : memref<128x128xf32, #tpu.memory_space<vmem>>, vector<128x128xf32>
      %29 = vector.broadcast %27 : vector<128x1xf32> to vector<128x128xf32>
      %30 = arith.mulf %28, %29 : vector<128x128xf32>
      %31 = arith.truncf %30 : vector<128x128xf32> to vector<128x128xbf16>
      %c0_14 = arith.constant 0 : index
      %c0_15 = arith.constant 0 : index
      %32 = vector.load %arg5[%c0_14, %c0_15] : memref<128x128xbf16, #tpu.memory_space<vmem>>, vector<128x128xbf16>
      %cst_16 = arith.constant dense<0.000000e+00> : vector<128x128xf32>
      %33 = tpu.matmul %31, %32, %cst_16 {dimension_numbers = #tpu.dot_dimension_numbers<[1], [0], [0], [1], [0, 0, 1, 1], [], []>} : vector<128x128xbf16>, vector<128x128xbf16>, vector<128x128xf32> -> vector<128x128xf32>
      %34 = arith.truncf %33 : vector<128x128xf32> to vector<128x128xbf16>
      %c0_17 = arith.constant 0 : index
      %35 = arith.index_cast %3 : i32 to index
      %c0_18 = arith.constant 0 : index
      %36 = vector.load %arg11[%c0_17, %35, %c0_18] : memref<2x128x128xbf16, #tpu.memory_space<vmem>>, vector<1x128x128xbf16>
      %37 = vector.shape_cast %36 : vector<1x128x128xbf16> to vector<128x128xbf16>
      %38 = vector.shape_cast %34 : vector<128x128xbf16> to vector<1x128x128xbf16>
      tpu.vector_store %arg11[%c0_17, %35, %c0_18], %38 {strides = array<i32>} : memref<2x128x128xbf16, #tpu.memory_space<vmem>>, vector<1x128x128xbf16>,
    } else {
    }
    %c0_i32_3 = arith.constant 0 : i32
    %9 = arith.cmpi eq, %arg2, %c0_i32_3 : i32
    %10 = arith.extui %9 : i1 to i32
    %c0_i32_4 = arith.constant 0 : i32
    %11 = arith.cmpi ne, %10, %c0_i32_4 : i32
    scf.if %11 {
      %cst_11 = arith.constant 0.000000e+00 : f32
      %26 = vector.broadcast %cst_11 : f32 to vector<128x128xf32>
      %c0_12 = arith.constant 0 : index
      %c0_13 = arith.constant 0 : index
      %27 = vector.load %arg12[%c0_12, %c0_13] : memref<128x128xf32, #tpu.memory_space<vmem>>, vector<128x128xf32>
      tpu.vector_store %arg12[%c0_12, %c0_13], %26 {strides = array<i32>} : memref<128x128xf32, #tpu.memory_space<vmem>>, vector<128x128xf32>,
    } else {
    }
    %12 = arith.index_cast %1 : i32 to index
    %13 = arith.index_cast %3 : i32 to index
    %14 = vector.load %arg3[%12, %13] : memref<128x128xbf16, #tpu.memory_space<vmem>>, vector<128x128xbf16>
    %15 = arith.index_cast %arg0 : i32 to index
    %16 = arith.index_cast %3 : i32 to index
    %c0 = arith.constant 0 : index
    %17 = vector.load %arg11[%15, %16, %c0] : memref<2x128x128xbf16, #tpu.memory_space<vmem>>, vector<1x128x128xbf16>
    %18 = vector.shape_cast %17 : vector<1x128x128xbf16> to vector<128x128xbf16>
    %c0_5 = arith.constant 0 : index
    %c0_6 = arith.constant 0 : index
    %19 = vector.load %arg12[%c0_5, %c0_6] : memref<128x128xf32, #tpu.memory_space<vmem>>, vector<128x128xf32>
    %cst = arith.constant dense<0.000000e+00> : vector<128x128xf32>
    %20 = tpu.matmul %14, %18, %cst {dimension_numbers = #tpu.dot_dimension_numbers<[1], [0], [0], [1], [0, 0, 1, 1], [], []>} : vector<128x128xbf16>, vector<128x128xbf16>, vector<128x128xf32> -> vector<128x128xf32>
    %21 = arith.addf %19, %20 : vector<128x128xf32>
    %c0_7 = arith.constant 0 : index
    %c0_8 = arith.constant 0 : index
    %22 = vector.load %arg12[%c0_7, %c0_8] : memref<128x128xf32, #tpu.memory_space<vmem>>, vector<128x128xf32>
    tpu.vector_store %arg12[%c0_7, %c0_8], %21 {strides = array<i32>} : memref<128x128xf32, #tpu.memory_space<vmem>>, vector<128x128xf32>,
    %c0_i32_9 = arith.constant 0 : i32
    %23 = arith.cmpi eq, %arg2, %c0_i32_9 : i32
    %24 = arith.extui %23 : i1 to i32
    %c0_i32_10 = arith.constant 0 : i32
    %25 = arith.cmpi ne, %24, %c0_i32_10 : i32
    scf.if %25 {
      %26 = arith.index_cast %1 : i32 to index
      %c0_11 = arith.constant 0 : index
      %27 = vector.load %arg9[%26, %c0_11] : memref<128x1xf32, #tpu.memory_space<vmem>>, vector<128x1xf32>
      %c0_12 = arith.constant 0 : index
      %c0_13 = arith.constant 0 : index
      %28 = vector.load %arg12[%c0_12, %c0_13] : memref<128x128xf32, #tpu.memory_space<vmem>>, vector<128x128xf32>
      %29 = vector.broadcast %27 : vector<128x1xf32> to vector<128x128xf32>
      %30 = arith.mulf %28, %29 : vector<128x128xf32>
      %c0_i32_14 = arith.constant 0 : i32
      %31 = arith.cmpi eq, %arg0, %c0_i32_14 : i32
      %32 = arith.extui %31 : i1 to i32
      %c0_i32_15 = arith.constant 0 : i32
      %33 = arith.cmpi ne, %32, %c0_i32_15 : i32
      scf.if %33 {
        %c0_17 = arith.constant 0 : index
        %c0_18 = arith.constant 0 : index
        %37 = vector.load %arg6[%c0_17, %c0_18] : memref<1x128xf32, #tpu.memory_space<vmem>>, vector<1x128xf32>
        %38 = vector.broadcast %37 : vector<1x128xf32> to vector<128x128xf32>
        %39 = arith.addf %30, %38 : vector<128x128xf32>
        %cst_19 = arith.constant 0.000000e+00 : f32
        %40 = vector.broadcast %cst_19 : f32 to vector<128x128xf32>
        %41 = arith.maximumf %39, %40 : vector<128x128xf32>
        %42 = vector.broadcast %27 : vector<128x1xf32> to vector<128x128xf32>
        %43 = arith.mulf %41, %42 : vector<128x128xf32>
        %44 = arith.truncf %43 : vector<128x128xf32> to vector<128x128xbf16>
        %c0_20 = arith.constant 0 : index
        %c0_21 = arith.constant 0 : index
        %45 = vector.load %arg7[%c0_20, %c0_21] : memref<128x128xbf16, #tpu.memory_space<vmem>>, vector<128x128xbf16>
        %cst_22 = arith.constant dense<0.000000e+00> : vector<128x128xf32>
        %46 = tpu.matmul %44, %45, %cst_22 {dimension_numbers = #tpu.dot_dimension_numbers<[1], [0], [0], [1], [0, 0, 1, 1], [], []>} : vector<128x128xbf16>, vector<128x128xbf16>, vector<128x128xf32> -> vector<128x128xf32>
        %47 = arith.truncf %46 : vector<128x128xf32> to vector<128x128xbf16>
        %c1 = arith.constant 1 : index
        %48 = arith.index_cast %1 : i32 to index
        %c0_23 = arith.constant 0 : index
        %49 = vector.load %arg11[%c1, %48, %c0_23] : memref<2x128x128xbf16, #tpu.memory_space<vmem>>, vector<1x128x128xbf16>
        %50 = vector.shape_cast %49 : vector<1x128x128xbf16> to vector<128x128xbf16>
        %51 = vector.shape_cast %47 : vector<128x128xbf16> to vector<1x128x128xbf16>
        tpu.vector_store %arg11[%c1, %48, %c0_23], %51 {strides = array<i32>} : memref<2x128x128xbf16, #tpu.memory_space<vmem>>, vector<1x128x128xbf16>,
      } else {
      }
      %c1_i32 = arith.constant 1 : i32
      %34 = arith.cmpi eq, %arg0, %c1_i32 : i32
      %35 = arith.extui %34 : i1 to i32
      %c0_i32_16 = arith.constant 0 : i32
      %36 = arith.cmpi ne, %35, %c0_i32_16 : i32
      scf.if %36 {
        %c0_17 = arith.constant 0 : index
        %c0_18 = arith.constant 0 : index
        %37 = vector.load %arg8[%c0_17, %c0_18] : memref<1x128xf32, #tpu.memory_space<vmem>>, vector<1x128xf32>
        %38 = vector.broadcast %37 : vector<1x128xf32> to vector<128x128xf32>
        %39 = arith.addf %30, %38 : vector<128x128xf32>
        %c0_19 = arith.constant 0 : index
        %c0_20 = arith.constant 0 : index
        %40 = vector.load %arg10[%c0_19, %c0_20] : memref<128x128xf32, #tpu.memory_space<vmem>>, vector<128x128xf32>
        tpu.vector_store %arg10[%c0_19, %c0_20], %39 {strides = array<i32>} : memref<128x128xf32, #tpu.memory_space<vmem>>, vector<128x128xf32>,
      } else {
      }
    } else {
    }
    return
  }
  func.func @transform_0(%arg0: i32, %arg1: i32, %arg2: i32) -> (i32, i32) {
    %c0_i32 = arith.constant 0 : i32
    %c0_i32_0 = arith.constant 0 : i32
    %c0_i32_1 = arith.constant 0 : i32
    return %c0_i32, %c0_i32_0 : i32, i32
  }
  func.func @transform_1(%arg0: i32, %arg1: i32, %arg2: i32) -> (i32, i32) {
    %c0_i32 = arith.constant 0 : i32
    %0 = arith.cmpi eq, %arg0, %c0_i32 : i32
    %c0_i32_0 = arith.constant 0 : i32
    %1 = arith.cmpi eq, %arg1, %c0_i32_0 : i32
    %2 = arith.andi %0, %1 : i1
    %c0_i32_1 = arith.constant 0 : i32
    %3 = arith.select %2, %arg2, %c0_i32_1 : i32
    %c0_i32_2 = arith.constant 0 : i32
    %c0_i32_3 = arith.constant 0 : i32
    return %3, %c0_i32_2 : i32, i32
  }
  func.func @transform_2(%arg0: i32, %arg1: i32, %arg2: i32) -> (i32, i32) {
    %c0_i32 = arith.constant 0 : i32
    %c0_i32_0 = arith.constant 0 : i32
    %c0_i32_1 = arith.constant 0 : i32
    return %c0_i32, %c0_i32_0 : i32, i32
  }
  func.func @transform_3(%arg0: i32, %arg1: i32, %arg2: i32) -> (i32, i32) {
    %c0_i32 = arith.constant 0 : i32
    %c0_i32_0 = arith.constant 0 : i32
    %c0_i32_1 = arith.constant 0 : i32
    return %c0_i32, %c0_i32_0 : i32, i32
  }
  func.func @transform_4(%arg0: i32, %arg1: i32, %arg2: i32) -> (i32, i32) {
    %c0_i32 = arith.constant 0 : i32
    %c0_i32_0 = arith.constant 0 : i32
    %c0_i32_1 = arith.constant 0 : i32
    return %c0_i32, %c0_i32_0 : i32, i32
  }
  func.func @transform_5(%arg0: i32, %arg1: i32, %arg2: i32) -> (i32, i32) {
    %c0_i32 = arith.constant 0 : i32
    %c0_i32_0 = arith.constant 0 : i32
    %c0_i32_1 = arith.constant 0 : i32
    return %c0_i32, %c0_i32_0 : i32, i32
  }
  func.func @transform_6(%arg0: i32, %arg1: i32, %arg2: i32) -> (i32, i32) {
    %c0_i32 = arith.constant 0 : i32
    %c0_i32_0 = arith.constant 0 : i32
    %c0_i32_1 = arith.constant 0 : i32
    return %c0_i32, %c0_i32_0 : i32, i32
  }
  func.func @transform_7(%arg0: i32, %arg1: i32, %arg2: i32) -> (i32, i32) {
    %0 = arith.muli %arg0, %arg1 : i32
    %c0_i32 = arith.constant 0 : i32
    %c0_i32_0 = arith.constant 0 : i32
    return %0, %c0_i32 : i32, i32
  }
}

</mosaic_0001>

<llo_original>
// kernel: gcn_forward.1
$region0: #{gcn_forward.1}
  #allocation0 [shape = 'u32[]', space=smem, size = 0x4, offset = 0x4, fixed_abs, tag = 'smem constant byte address 0x4 - core index']
  #allocation1 [shape = 'u32[144,128]{1,0:T(1,128)}', space=vmem, size = 0x12000, scoped, tag = 'internal scratch']
  #allocation2 [shape = 'bf16[2,128,128]{2,1,0:T(8,128)(2,1)}', space=vmem, size = 0x10000, scoped, tag = 'scratch operand']
  #allocation3 [shape = 'f32[128,128]{1,0:T(8,128)}', space=vmem, size = 0x10000, scoped, tag = 'scratch operand']
  %s0 = inlined_call_operand.vmem [shape: bf16[128,128], index: 0, kind: input, shape index: {}]
  %s1 = inlined_call_operand.vmem [shape: f32[128,128], index: 1, kind: input, shape index: {}]
  %s2 = inlined_call_operand.vmem [shape: bf16[128,128], index: 2, kind: input, shape index: {}]
  %s3 = inlined_call_operand.vmem [shape: f32[1,128], index: 3, kind: input, shape index: {}]
  %s4 = inlined_call_operand.vmem [shape: bf16[128,128], index: 4, kind: input, shape index: {}]
  %s5 = inlined_call_operand.vmem [shape: f32[1,128], index: 5, kind: input, shape index: {}]
  %s6 = inlined_call_operand.vmem [shape: f32[128,1], index: 6, kind: input, shape index: {}]
  %s7 = inlined_call_operand.vmem [shape: f32[128,128], index: 7, kind: output, shape index: {}]
  %s8 = sld [smem:[#allocation0]]
  $region81: #{gcn_forward.1} parent=0
    _
  %s10 = ssub.s32 1, %s8
  %s11 = scalar_select 0, %s10, %s8
  loop: start=0, step=1, limit=4
  $region2: #{gcn_forward.1} parent=0 // loop_pre_header
    _
  $region3: #{gcn_forward.1} parent=0 // loop_header
    %s13 = sphi 0, %s17
    %p14 = scmp.ge.s32.totalorder %s13, 4
    %s20 = sphi 0, %s39
    %s21 = sphi 0, %s35
    %s22 = sphi 0, %s31
    %s23 = sphi 0, %s20
    %s24 = sphi 0, %s21
    %s25 = sphi 0, %s22
    %s26 = sphi 0, %s23
    %s27 = sphi 0, %s24
    %s28 = sphi 0, %s25
    %s40 = sphi 0, %s40
    %s42 = sphi 0, %s40
    %s43 = sphi 0, %s42
    %s57 = sphi 0, %s43
    %s73 = sphi 0, %s75
    %s76 = sphi 0, %s73
    %s77 = sphi 0, %s76
    %s93 = sphi 0, %s77
    %s97 = sphi 0, %s97
    %s99 = sphi 0, %s97
    %s100 = sphi 0, %s99
    %s114 = sphi 0, %s100
    %s118 = sphi 0, %s118
    %s120 = sphi 0, %s118
    %s121 = sphi 0, %s120
    %s135 = sphi 0, %s121
    %s139 = sphi 0, %s139
    %s141 = sphi 0, %s139
    %s142 = sphi 0, %s141
    %s156 = sphi 0, %s142
    %s160 = sphi 0, %s160
    %s162 = sphi 0, %s160
    %s163 = sphi 0, %s162
    %s177 = sphi 0, %s163
    %s181 = sphi 0, %s181
    %s183 = sphi 0, %s181
    %s184 = sphi 0, %s183
    %s198 = sphi 0, %s184
    %s206 = sphi 0, %s208
    %s209 = sphi 0, %s206
    %s210 = sphi 0, %s209
    %s226 = sphi 0, %s210
  $region4: #{gcn_forward.1} parent=0 // loop_header_branch
    %16 = sbr.rel (%p14) target = $region8
  $region5: #{gcn_forward.1} parent=0 // loop_body
    %s18 = ssub.s32 %s13, 1
    %s19 = ssub.s32 %s13, 2
    %s29 = sadd.s32 1, %s22
    %p30 = scmp.ge.s32.totalorder %s29, 1
    %s31 = scalar_select %p30, 0, %s29
    %s32 = sadd.s32 1, %s21
    %s33 = scalar_select %p30, %s32, %s21
    %p34 = scmp.ge.s32.totalorder %s33, 1
    %s35 = scalar_select %p34, 0, %s33
    %s36 = sadd.s32 1, %s20
    %s37 = scalar_select %p34, %s36, %s20
    %p38 = scmp.ge.s32.totalorder %s37, 2
    %s39 = scalar_select %p38, 0, %s37
    %s41 = sadd.s32 %s40, 1
    %p44 = scmp.eq.s32.totalorder %s13, 1
    %p45 = scmp.ne.s32.totalorder %s40, %s42
    %p46 = scmp.eq.s32.totalorder %s13, 0
    %p47 = por %p45, %p46
    %p48 = scmp.ne.s32.totalorder %s40, %s42
    %p49 = scmp.eq.s32.totalorder %s18, 1
    %p50 = por %p48, %p49
    %p51 = scmp.ne.s32.totalorder %s42, %s43
    %p52 = scmp.eq.s32.totalorder %s18, 0
    %p53 = por %p51, %p52
    %p54 = scmp.ne.s32.totalorder %s42, %s43
    %p55 = scmp.eq.s32.totalorder %s19, 1
    %p56 = por %p54, %p55
    %p58 = scmp.ne.s32.totalorder %s43, %s57
    %p59 = scmp.eq.s32.totalorder %s19, 0
    %p60 = por %p58, %p59
    %p61 = scmp.eq.s32.totalorder %s20, 0
    %p62 = scmp.eq.s32.totalorder %s21, 0
    %p63 = pnand %p61, %p62
    %p64 = pneg %p63
    %s65 = scalar_select %p64, %s22, 0
    %p66 = scmp.eq.s32.totalorder %s39, 0
    %p67 = scmp.eq.s32.totalorder %s35, 0
    %p68 = pnand %p66, %p67
    %p69 = pneg %p68
    %s70 = scalar_select %p69, %s31, 0
    %s71 = ssub.s32 %s65, %s70
    %p72 = scmp.eq.s32.totalorder %s71, 0
    %s74 = sadd.s32 %s73, 1
    %s75 = scalar_select %p72, %s73, %s74
    %p78 = pneg %p72
    %p79 = scmp.eq.s32.totalorder %s13, 1
    %p80 = por %p78, %p79
    %p81 = scmp.ne.s32.totalorder %s73, %s76
    %p82 = scmp.eq.s32.totalorder %s13, 0
    %p83 = por %p81, %p82
    %p84 = scmp.ne.s32.totalorder %s73, %s76
    %p85 = scmp.eq.s32.totalorder %s18, 1
    %p86 = por %p84, %p85
    %p87 = scmp.ne.s32.totalorder %s76, %s77
    %p88 = scmp.eq.s32.totalorder %s18, 0
    %p89 = por %p87, %p88
    %p90 = scmp.ne.s32.totalorder %s76, %s77
    %p91 = scmp.eq.s32.totalorder %s19, 1
    %p92 = por %p90, %p91
    %p94 = scmp.ne.s32.totalorder %s77, %s93
    %p95 = scmp.eq.s32.totalorder %s19, 0
    %p96 = por %p94, %p95
    %s98 = sadd.s32 %s97, 1
    %p101 = scmp.eq.s32.totalorder %s13, 1
    %p102 = scmp.ne.s32.totalorder %s97, %s99
    %p103 = scmp.eq.s32.totalorder %s13, 0
    %p104 = por %p102, %p103
    %p105 = scmp.ne.s32.totalorder %s97, %s99
    %p106 = scmp.eq.s32.totalorder %s18, 1
    %p107 = por %p105, %p106
    %p108 = scmp.ne.s32.totalorder %s99, %s100
    %p109 = scmp.eq.s32.totalorder %s18, 0
    %p110 = por %p108, %p109
    %p111 = scmp.ne.s32.totalorder %s99, %s100
    %p112 = scmp.eq.s32.totalorder %s19, 1
    %p113 = por %p111, %p112
    %p115 = scmp.ne.s32.totalorder %s100, %s114
    %p116 = scmp.eq.s32.totalorder %s19, 0
    %p117 = por %p115, %p116
    %s119 = sadd.s32 %s118, 1
    %p122 = scmp.eq.s32.totalorder %s13, 1
    %p123 = scmp.ne.s32.totalorder %s118, %s120
    %p124 = scmp.eq.s32.totalorder %s13, 0
    %p125 = por %p123, %p124
    %p126 = scmp.ne.s32.totalorder %s118, %s120
    %p127 = scmp.eq.s32.totalorder %s18, 1
    %p128 = por %p126, %p127
    %p129 = scmp.ne.s32.totalorder %s120, %s121
    %p130 = scmp.eq.s32.totalorder %s18, 0
    %p131 = por %p129, %p130
    %p132 = scmp.ne.s32.totalorder %s120, %s121
    %p133 = scmp.eq.s32.totalorder %s19, 1
    %p134 = por %p132, %p133
    %p136 = scmp.ne.s32.totalorder %s121, %s135
    %p137 = scmp.eq.s32.totalorder %s19, 0
    %p138 = por %p136, %p137
    %s140 = sadd.s32 %s139, 1
    %p143 = scmp.eq.s32.totalorder %s13, 1
    %p144 = scmp.ne.s32.totalorder %s139, %s141
    %p145 = scmp.eq.s32.totalorder %s13, 0
    %p146 = por %p144, %p145
    %p147 = scmp.ne.s32.totalorder %s139, %s141
    %p148 = scmp.eq.s32.totalorder %s18, 1
    %p149 = por %p147, %p148
    %p150 = scmp.ne.s32.totalorder %s141, %s142
    %p151 = scmp.eq.s32.totalorder %s18, 0
    %p152 = por %p150, %p151
    %p153 = scmp.ne.s32.totalorder %s141, %s142
    %p154 = scmp.eq.s32.totalorder %s19, 1
    %p155 = por %p153, %p154
    %p157 = scmp.ne.s32.totalorder %s142, %s156
    %p158 = scmp.eq.s32.totalorder %s19, 0
    %p159 = por %p157, %p158
    %s161 = sadd.s32 %s160, 1
    %p164 = scmp.eq.s32.totalorder %s13, 1
    %p165 = scmp.ne.s32.totalorder %s160, %s162
    %p166 = scmp.eq.s32.totalorder %s13, 0
    %p167 = por %p165, %p166
    %p168 = scmp.ne.s32.totalorder %s160, %s162
    %p169 = scmp.eq.s32.totalorder %s18, 1
    %p170 = por %p168, %p169
    %p171 = scmp.ne.s32.totalorder %s162, %s163
    %p172 = scmp.eq.s32.totalorder %s18, 0
    %p173 = por %p171, %p172
    %p174 = scmp.ne.s32.totalorder %s162, %s163
    %p175 = scmp.eq.s32.totalorder %s19, 1
    %p176 = por %p174, %p175
    %p178 = scmp.ne.s32.totalorder %s163, %s177
    %p179 = scmp.eq.s32.totalorder %s19, 0
    %p180 = por %p178, %p179
    %s182 = sadd.s32 %s181, 1
    %p185 = scmp.eq.s32.totalorder %s13, 1
    %p186 = scmp.ne.s32.totalorder %s181, %s183
    %p187 = scmp.eq.s32.totalorder %s13, 0
    %p188 = por %p186, %p187
    %p189 = scmp.ne.s32.totalorder %s181, %s183
    %p190 = scmp.eq.s32.totalorder %s18, 1
    %p191 = por %p189, %p190
    %p192 = scmp.ne.s32.totalorder %s183, %s184
    %p193 = scmp.eq.s32.totalorder %s18, 0
    %p194 = por %p192, %p193
    %p195 = scmp.ne.s32.totalorder %s183, %s184
    %p196 = scmp.eq.s32.totalorder %s19, 1
    %p197 = por %p195, %p196
    %p199 = scmp.ne.s32.totalorder %s184, %s198
    %p200 = scmp.eq.s32.totalorder %s19, 0
    %p201 = por %p199, %p200
    %s202 = smul.u32 %s20, %s21
    %s203 = smul.u32 %s39, %s35
    %s204 = ssub.s32 %s202, %s203
    %p205 = scmp.eq.s32.totalorder %s204, 0
    %s207 = sadd.s32 %s206, 1
    %s208 = scalar_select %p205, %s206, %s207
    %p211 = pneg %p205
    %p212 = scmp.eq.s32.totalorder %s13, 1
    %p213 = por %p211, %p212
    %p214 = scmp.ne.s32.totalorder %s206, %s209
    %p215 = scmp.eq.s32.totalorder %s13, 0
    %p216 = por %p214, %p215
    %p217 = scmp.ne.s32.totalorder %s206, %s209
    %p218 = scmp.eq.s32.totalorder %s18, 1
    %p219 = por %p217, %p218
    %p220 = scmp.ne.s32.totalorder %s209, %s210
    %p221 = scmp.eq.s32.totalorder %s18, 0
    %p222 = por %p220, %p221
    %p223 = scmp.ne.s32.totalorder %s209, %s210
    %p224 = scmp.eq.s32.totalorder %s19, 1
    %p225 = por %p223, %p224
    %p227 = scmp.ne.s32.totalorder %s210, %s226
    %p228 = scmp.eq.s32.totalorder %s19, 0
    %p229 = por %p227, %p228
    %p230 = scmp.le.s32.totalorder 1, %s13
    %p231 = scmp.lt.s32.totalorder %s13, 3
    %p232 = pnand %p230, %p231
    %p233 = pneg %p232
    // Predicated region
    $region9: #{gcn_forward.1} parent=5 // pred_check
      _
    $region10: #{gcn_forward.1} parent=5 // pred_check_branch
      %235 = sbr.rel (%p232) target = $region12
    $region11: #{gcn_forward.1} parent=5 // pred_region
      %s236 = ssub.s32 %s13, 1
      // Predicated region
      $region13: #{gcn_forward.1} parent=11 // pred_check
        %p237 = pneg %p53
      $region14: #{gcn_forward.1} parent=11 // pred_check_branch
        %239 = sbr.rel (%p237) target = $region16
      $region15: #{gcn_forward.1} parent=11 // pred_region
        _
      $region16: #{gcn_forward.1} parent=11 // pred_fallthru
        _
      // Predicated region
      $region17: #{gcn_forward.1} parent=11 // pred_check
        %p240 = pneg %p110
      $region18: #{gcn_forward.1} parent=11 // pred_check_branch
        %242 = sbr.rel (%p240) target = $region20
      $region19: #{gcn_forward.1} parent=11 // pred_region
        _
      $region20: #{gcn_forward.1} parent=11 // pred_fallthru
        _
      // Predicated region
      $region21: #{gcn_forward.1} parent=11 // pred_check
        %p243 = pneg %p131
      $region22: #{gcn_forward.1} parent=11 // pred_check_branch
        %245 = sbr.rel (%p243) target = $region24
      $region23: #{gcn_forward.1} parent=11 // pred_region
        _
      $region24: #{gcn_forward.1} parent=11 // pred_fallthru
        _
      // Predicated region
      $region25: #{gcn_forward.1} parent=11 // pred_check
        %p246 = pneg %p152
      $region26: #{gcn_forward.1} parent=11 // pred_check_branch
        %248 = sbr.rel (%p246) target = $region28
      $region27: #{gcn_forward.1} parent=11 // pred_region
        _
      $region28: #{gcn_forward.1} parent=11 // pred_fallthru
        _
      // Predicated region
      $region29: #{gcn_forward.1} parent=11 // pred_check
        %p249 = pneg %p173
      $region30: #{gcn_forward.1} parent=11 // pred_check_branch
        %251 = sbr.rel (%p249) target = $region32
      $region31: #{gcn_forward.1} parent=11 // pred_region
        _
      $region32: #{gcn_forward.1} parent=11 // pred_fallthru
        _
      // Predicated region
      $region33: #{gcn_forward.1} parent=11 // pred_check
        %p252 = pneg %p194
      $region34: #{gcn_forward.1} parent=11 // pred_check_branch
        %254 = sbr.rel (%p252) target = $region36
      $region35: #{gcn_forward.1} parent=11 // pred_region
        _
      $region36: #{gcn_forward.1} parent=11 // pred_fallthru
        _
    $region12: #{gcn_forward.1} parent=5 // pred_fallthru
      _
    %p255 = scmp.lt.s32.totalorder %s13, 2
    // Predicated region
    $region37: #{gcn_forward.1} parent=5 // pred_check
      %p256 = pneg %p255
    $region38: #{gcn_forward.1} parent=5 // pred_check_branch
      %258 = sbr.rel (%p256) target = $region40
    $region39: #{gcn_forward.1} parent=5 // pred_region
      // Predicated region
      $region41: #{gcn_forward.1} parent=39 // pred_check
        %p259 = pneg %p83
      $region42: #{gcn_forward.1} parent=39 // pred_check_branch
        %261 = sbr.rel (%p259) target = $region44
      $region43: #{gcn_forward.1} parent=39 // pred_region
        %p262 = scmp.eq.s32.totalorder %s20, 0
        %p263 = scmp.eq.s32.totalorder %s21, 0
        %p264 = pnand %p262, %p263
        %p265 = pneg %p264
        %s266 = scalar_select %p265, %s22, 0
        %s267 = smul.u32 16, %s266
        %p268 = scmp.lt.s32.totalorder %s267, 15
        %s269 = scalar_select %p268, %s267, 15
        %s270 = smul.addr %s269, 8
        %s271 = scalar_lea.vmem %s1, %s270
        %p272 = scmp.eq.s32.totalorder %s20, 0
        %p273 = scmp.eq.s32.totalorder %s21, 0
        %p274 = pnand %p272, %p273
        %p275 = pneg %p274
        %s276 = scalar_select %p275, %s22, 0
        %s277 = smul.u32 16, %s276
      $region44: #{gcn_forward.1} parent=39 // pred_fallthru
        _
    $region40: #{gcn_forward.1} parent=5 // pred_fallthru
      _
    %p278 = scmp.le.s32.totalorder 1, %s13
    %p279 = scmp.lt.s32.totalorder %s13, 3
    %p280 = pnand %p278, %p279
    %p281 = pneg %p280
    // Predicated region
    $region45: #{gcn_forward.1} parent=5 // pred_check
      _
    $region46: #{gcn_forward.1} parent=5 // pred_check_branch
      %283 = sbr.rel (%p280) target = $region48
    $region47: #{gcn_forward.1} parent=5 // pred_region
      %s284 = ssub.s32 %s13, 1
      %p285 = pneg %p53
      %p286 = pneg %p50
      %p287 = scmp.eq.s32.totalorder %s23, 0
      %p288 = scmp.eq.s32.totalorder %s24, 0
      %p289 = pnand %p287, %p288
      %p290 = pneg %p289
      %s291 = scalar_select %p290, %s25, 0
      %s292 = smul.u32 16, %s291
      %p293 = scmp.lt.s32.totalorder %s292, 15
      %s294 = scalar_select %p293, %s292, 15
      %s295 = smul.addr %s294, 8
      %s296 = scalar_lea.vmem %s1, %s295
      %p297 = pneg %p89
      %p298 = pneg %p86
      %p299 = pneg %p110
      %p300 = pneg %p107
      %p301 = pneg %p131
      %p302 = pneg %p128
      %p303 = pneg %p152
      %p304 = pneg %p149
      %p305 = pneg %p173
      %p306 = pneg %p170
      %p307 = pneg %p194
      %p308 = pneg %p191
      %p309 = pneg %p222
      %p310 = pneg %p219
      %s311 = smul.u32 %s23, %s24
      %s312 = smul.u32 16, %s311
      %p313 = scmp.lt.s32.totalorder %s312, 15
      %s314 = scalar_select %p313, %s312, 15
      %s315 = smul.addr %s314, 8
      %s316 = scalar_lea.vmem %s7, %s315
      %p317 = scmp.eq.s32.totalorder %s23, 0
      %p318 = scmp.eq.s32.totalorder %s24, 0
      %p319 = pnand %p317, %p318
      %p320 = pneg %p319
      %s321 = scalar_select %p320, %s25, 0
      %s322 = smul.u32 16, %s321
      %p323 = scmp.lt.s32.totalorder %s322, 15
      %s324 = scalar_select %p323, %s322, 15
      %s325 = smul.addr %s324, 8
      %s326 = scalar_lea.vmem %s1, %s325
      %p327 = scmp.eq.s32.totalorder %s23, 0
      %p328 = scmp.eq.s32.totalorder %s24, 0
      %p329 = pnand %p327, %p328
      %p330 = pneg %p329
      %s331 = scalar_select %p330, %s25, 0
      %s332 = smul.u32 16, %s331
      %s333 = smul.u32 %s23, %s24
      %s334 = smul.u32 16, %s333
      %p335 = scmp.lt.s32.totalorder %s334, 15
      %s336 = scalar_select %p335, %s334, 15
      %s337 = smul.addr %s336, 8
      %s338 = scalar_lea.vmem %s7, %s337
      %s339 = smul.u32 %s23, %s24
      %s340 = smul.u32 16, %s339
      %s342 = smul.u32 %s24, 128
      %s343 = smul.u32 %s25, 128
      %p344 = scmp.eq.s32.totalorder %s23, 0
      %p345 = scmp.eq.s32.totalorder %s24, 0
      %p346 = pnand %p344, %p345
      %p347 = pneg %p346
      // Predicated region
      $region49: #{gcn_forward.1} parent=47 // pred_check
        _
      $region50: #{gcn_forward.1} parent=47 // pred_check_branch
        %349 = sbr.rel (%p346) target = $region52
      $region51: #{gcn_forward.1} parent=47 // pred_region
        %s350 = scalar_lea.vmem %s6, %s343
        %v351 = vld [vmem:[%s350] sm:$0xff]
        %v352 = vld [vmem:[%s350 + $0x8] sm:$0xff]
        %v353 = vld [vmem:[%s350 + $0x10] sm:$0xff]
        %v354 = vld [vmem:[%s350 + $0x18] sm:$0xff]
        %v355 = vld [vmem:[%s350 + $0x20] sm:$0xff]
        %v356 = vld [vmem:[%s350 + $0x28] sm:$0xff]
        %v357 = vld [vmem:[%s350 + $0x30] sm:$0xff]
        %v358 = vld [vmem:[%s350 + $0x38] sm:$0xff]
        %v359 = vld [vmem:[%s350 + $0x40] sm:$0xff]
        %v360 = vld [vmem:[%s350 + $0x48] sm:$0xff]
        %v361 = vld [vmem:[%s350 + $0x50] sm:$0xff]
        %v362 = vld [vmem:[%s350 + $0x58] sm:$0xff]
        %v363 = vld [vmem:[%s350 + $0x60] sm:$0xff]
        %v364 = vld [vmem:[%s350 + $0x68] sm:$0xff]
        %v365 = vld [vmem:[%s350 + $0x70] sm:$0xff]
        %v366 = vld [vmem:[%s350 + $0x78] sm:$0xff]
        %v367 = vld [vmem:[%s326] sm:$0xff]
        %v368 = vld [vmem:[%s326 + $0x8] sm:$0xff]
        %v369 = vld [vmem:[%s326 + $0x10] sm:$0xff]
        %v370 = vld [vmem:[%s326 + $0x18] sm:$0xff]
        %v371 = vld [vmem:[%s326 + $0x20] sm:$0xff]
        %v372 = vld [vmem:[%s326 + $0x28] sm:$0xff]
        %v373 = vld [vmem:[%s326 + $0x30] sm:$0xff]
        %v374 = vld [vmem:[%s326 + $0x38] sm:$0xff]
        %v375 = vld [vmem:[%s326 + $0x40] sm:$0xff]
        %v376 = vld [vmem:[%s326 + $0x48] sm:$0xff]
        %v377 = vld [vmem:[%s326 + $0x50] sm:$0xff]
        %v378 = vld [vmem:[%s326 + $0x58] sm:$0xff]
        %v379 = vld [vmem:[%s326 + $0x60] sm:$0xff]
        %v380 = vld [vmem:[%s326 + $0x68] sm:$0xff]
        %v381 = vld [vmem:[%s326 + $0x70] sm:$0xff]
        %v382 = vld [vmem:[%s326 + $0x78] sm:$0xff]
        %384 = vset.pattern.permute.xlu0 0
        %385 = vperm.xlu0 %384, %v351
        %v386 = vpop.permute.xlu0 %385
        %389 = vset.pattern.permute.xlu0 0
        %390 = vperm.xlu0 %389, %v352
        %v391 = vpop.permute.xlu0 %390
        %394 = vset.pattern.permute.xlu0 0
        %395 = vperm.xlu0 %394, %v353
        %v396 = vpop.permute.xlu0 %395
        %399 = vset.pattern.permute.xlu0 0
        %400 = vperm.xlu0 %399, %v354
        %v401 = vpop.permute.xlu0 %400
        %404 = vset.pattern.permute.xlu0 0
        %405 = vperm.xlu0 %404, %v355
        %v406 = vpop.permute.xlu0 %405
        %409 = vset.pattern.permute.xlu0 0
        %410 = vperm.xlu0 %409, %v356
        %v411 = vpop.permute.xlu0 %410
        %414 = vset.pattern.permute.xlu0 0
        %415 = vperm.xlu0 %414, %v357
        %v416 = vpop.permute.xlu0 %415
        %419 = vset.pattern.permute.xlu0 0
        %420 = vperm.xlu0 %419, %v358
        %v421 = vpop.permute.xlu0 %420
        %424 = vset.pattern.permute.xlu0 0
        %425 = vperm.xlu0 %424, %v359
        %v426 = vpop.permute.xlu0 %425
        %429 = vset.pattern.permute.xlu0 0
        %430 = vperm.xlu0 %429, %v360
        %v431 = vpop.permute.xlu0 %430
        %434 = vset.pattern.permute.xlu0 0
        %435 = vperm.xlu0 %434, %v361
        %v436 = vpop.permute.xlu0 %435
        %439 = vset.pattern.permute.xlu0 0
        %440 = vperm.xlu0 %439, %v362
        %v441 = vpop.permute.xlu0 %440
        %444 = vset.pattern.permute.xlu0 0
        %445 = vperm.xlu0 %444, %v363
        %v446 = vpop.permute.xlu0 %445
        %449 = vset.pattern.permute.xlu0 0
        %450 = vperm.xlu0 %449, %v364
        %v451 = vpop.permute.xlu0 %450
        %454 = vset.pattern.permute.xlu0 0
        %455 = vperm.xlu0 %454, %v365
        %v456 = vpop.permute.xlu0 %455
        %459 = vset.pattern.permute.xlu0 0
        %460 = vperm.xlu0 %459, %v366
        %v461 = vpop.permute.xlu0 %460
        %v463 = vmul.f32 %v367, %v386
        %v464 = vmul.f32 %v368, %v391
        %v465 = vmul.f32 %v369, %v396
        %v466 = vmul.f32 %v370, %v401
        %v467 = vmul.f32 %v371, %v406
        %v468 = vmul.f32 %v372, %v411
        %v469 = vmul.f32 %v373, %v416
        %v470 = vmul.f32 %v374, %v421
        %v471 = vmul.f32 %v375, %v426
        %v472 = vmul.f32 %v376, %v431
        %v473 = vmul.f32 %v377, %v436
        %v474 = vmul.f32 %v378, %v441
        %v475 = vmul.f32 %v379, %v446
        %v476 = vmul.f32 %v380, %v451
        %v477 = vmul.f32 %v381, %v456
        %v478 = vmul.f32 %v382, %v461
        %v479 = vpack.c.bf16 %v464, %v463
        %v480 = vpack.c.bf16 %v466, %v465
        %v481 = vpack.c.bf16 %v468, %v467
        %v482 = vpack.c.bf16 %v470, %v469
        %v483 = vpack.c.bf16 %v472, %v471
        %v484 = vpack.c.bf16 %v474, %v473
        %v485 = vpack.c.bf16 %v476, %v475
        %v486 = vpack.c.bf16 %v478, %v477
        %v487 = vld [vmem:[%s2] sm:$0xf]
        %v488 = vld [vmem:[%s2 + $0x4] sm:$0xf]
        %v489 = vld [vmem:[%s2 + $0x8] sm:$0xf]
        %v490 = vld [vmem:[%s2 + $0xc] sm:$0xf]
        %v491 = vld [vmem:[%s2 + $0x10] sm:$0xf]
        %v492 = vld [vmem:[%s2 + $0x14] sm:$0xf]
        %v493 = vld [vmem:[%s2 + $0x18] sm:$0xf]
        %v494 = vld [vmem:[%s2 + $0x1c] sm:$0xf]
        %v495 = vld [vmem:[%s2 + $0x20] sm:$0xf]
        %v496 = vld [vmem:[%s2 + $0x24] sm:$0xf]
        %v497 = vld [vmem:[%s2 + $0x28] sm:$0xf]
        %v498 = vld [vmem:[%s2 + $0x2c] sm:$0xf]
        %v499 = vld [vmem:[%s2 + $0x30] sm:$0xf]
        %v500 = vld [vmem:[%s2 + $0x34] sm:$0xf]
        %v501 = vld [vmem:[%s2 + $0x38] sm:$0xf]
        %v502 = vld [vmem:[%s2 + $0x3c] sm:$0xf]
        %v519 = vunpack.c.l.b16 %v487
        %v520 = vunpack.c.l.b16 %v488
        %v521 = vunpack.c.l.b16 %v489
        %v522 = vunpack.c.l.b16 %v490
        %v523 = vunpack.c.l.b16 %v491
        %v524 = vunpack.c.l.b16 %v492
        %v525 = vunpack.c.l.b16 %v493
        %v526 = vunpack.c.l.b16 %v494
        %v527 = vunpack.c.l.b16 %v495
        %v528 = vunpack.c.l.b16 %v496
        %v529 = vunpack.c.l.b16 %v497
        %v530 = vunpack.c.l.b16 %v498
        %v531 = vunpack.c.l.b16 %v499
        %v532 = vunpack.c.l.b16 %v500
        %v533 = vunpack.c.l.b16 %v501
        %v534 = vunpack.c.l.b16 %v502
        %v535 = vpack.c.b16 %v520, %v519
        %v536 = vpack.c.b16 %v522, %v521
        %v537 = vpack.c.b16 %v524, %v523
        %v538 = vpack.c.b16 %v526, %v525
        %v539 = vpack.c.b16 %v528, %v527
        %v540 = vpack.c.b16 %v530, %v529
        %v541 = vpack.c.b16 %v532, %v531
        %v542 = vpack.c.b16 %v534, %v533
        %551 = vmatprep.subr.bf16.mxu0 0
        %552 = vmatpush1.bf16.msra.mxu0 %v542
        %553 = vmatprep.subr.bf16.mxu0 0
        %554 = vmatpush1.bf16.msra.mxu0 %v541
        %555 = vmatprep.subr.bf16.mxu0 0
        %556 = vmatpush1.bf16.msra.mxu0 %v540
        %557 = vmatprep.subr.bf16.mxu0 0
        %558 = vmatpush1.bf16.msra.mxu0 %v539
        %559 = vmatprep.subr.bf16.mxu0 0
        %560 = vmatpush1.bf16.msra.mxu0 %v538
        %561 = vmatprep.subr.bf16.mxu0 0
        %562 = vmatpush1.bf16.msra.mxu0 %v537
        %563 = vmatprep.subr.bf16.mxu0 0
        %564 = vmatpush1.bf16.msra.mxu0 %v536
        %565 = vmatprep.subr.bf16.mxu0 0
        %566 = vmatpush1.bf16.msra.mxu0 %v535
        %567 = vmatprep.subr.bf16.mxu0 0
        %568 = vmatpush2.bf16.msra.mxu0 0
        %569 = vmatprep.subr.bf16.mxu0 0
        %570 = vmatpush2.bf16.msra.mxu0 0
        %571 = vmatprep.subr.bf16.mxu0 0
        %572 = vmatpush2.bf16.msra.mxu0 0
        %573 = vmatprep.subr.bf16.mxu0 0
        %574 = vmatpush2.bf16.msra.mxu0 0
        %575 = vmatprep.subr.bf16.mxu0 0
        %576 = vmatpush2.bf16.msra.mxu0 0
        %577 = vmatprep.subr.bf16.mxu0 0
        %578 = vmatpush2.bf16.msra.mxu0 0
        %579 = vmatprep.subr.bf16.mxu0 0
        %580 = vmatpush2.bf16.msra.mxu0 0
        %581 = vmatprep.subr.bf16.mxu0 0
        %582 = vmatpush2.bf16.msra.mxu0 0
        %583 = vmatprep.mubr.bf16.mxu0 0
        %584 = vmatmul.mubr.bf16.gmra.mxu0 %v479
        %v585 = vpop.f32.mrf.mxu0
        %v586 = vadd.f32 0.0, %v585
        %v587 = vpop.f32.mrf.mxu0
        %v588 = vpop.f32.mrf.mxu0
        %v589 = vadd.f32 0.0, %v588
        %v590 = vpop.f32.mrf.mxu0
        %591 = vmatprep.mubr.bf16.mxu0 0
        %592 = vmatmul.mubr.bf16.gmra.mxu0 %v480
        %v593 = vpop.f32.mrf.mxu0
        %v594 = vadd.f32 0.0, %v593
        %v595 = vpop.f32.mrf.mxu0
        %v596 = vpop.f32.mrf.mxu0
        %v597 = vadd.f32 0.0, %v596
        %v598 = vpop.f32.mrf.mxu0
        %599 = vmatprep.mubr.bf16.mxu0 0
        %600 = vmatmul.mubr.bf16.gmra.mxu0 %v481
        %v601 = vpop.f32.mrf.mxu0
        %v602 = vadd.f32 0.0, %v601
        %v603 = vpop.f32.mrf.mxu0
        %v604 = vpop.f32.mrf.mxu0
        %v605 = vadd.f32 0.0, %v604
        %v606 = vpop.f32.mrf.mxu0
        %607 = vmatprep.mubr.bf16.mxu0 0
        %608 = vmatmul.mubr.bf16.gmra.mxu0 %v482
        %v609 = vpop.f32.mrf.mxu0
        %v610 = vadd.f32 0.0, %v609
        %v611 = vpop.f32.mrf.mxu0
        %v612 = vpop.f32.mrf.mxu0
        %v613 = vadd.f32 0.0, %v612
        %v614 = vpop.f32.mrf.mxu0
        %615 = vmatprep.mubr.bf16.mxu0 0
        %616 = vmatmul.mubr.bf16.gmra.mxu0 %v483
        %v617 = vpop.f32.mrf.mxu0
        %v618 = vadd.f32 0.0, %v617
        %v619 = vpop.f32.mrf.mxu0
        %v620 = vpop.f32.mrf.mxu0
        %v621 = vadd.f32 0.0, %v620
        %v622 = vpop.f32.mrf.mxu0
        %623 = vmatprep.mubr.bf16.mxu0 0
        %624 = vmatmul.mubr.bf16.gmra.mxu0 %v484
        %v625 = vpop.f32.mrf.mxu0
        %v626 = vadd.f32 0.0, %v625
        %v627 = vpop.f32.mrf.mxu0
        %v628 = vpop.f32.mrf.mxu0
        %v629 = vadd.f32 0.0, %v628
        %v630 = vpop.f32.mrf.mxu0
        %631 = vmatprep.mubr.bf16.mxu0 0
        %632 = vmatmul.mubr.bf16.gmra.mxu0 %v485
        %v633 = vpop.f32.mrf.mxu0
        %v634 = vadd.f32 0.0, %v633
        %v635 = vpop.f32.mrf.mxu0
        %v636 = vpop.f32.mrf.mxu0
        %v637 = vadd.f32 0.0, %v636
        %v638 = vpop.f32.mrf.mxu0
        %639 = vmatprep.mubr.bf16.mxu0 0
        %640 = vmatmul.mubr.bf16.gmra.mxu0 %v486
        %v641 = vpop.f32.mrf.mxu0
        %v642 = vadd.f32 0.0, %v641
        %v643 = vpop.f32.mrf.mxu0
        %v644 = vpop.f32.mrf.mxu0
        %v645 = vadd.f32 0.0, %v644
        %v646 = vpop.f32.mrf.mxu0
        %647 = vdwg.mxu0
        %v648 = vpack.c.bf16 %v589, %v586
        %v649 = vpack.c.bf16 %v597, %v594
        %v650 = vpack.c.bf16 %v605, %v602
        %v651 = vpack.c.bf16 %v613, %v610
        %v652 = vpack.c.bf16 %v621, %v618
        %v653 = vpack.c.bf16 %v629, %v626
        %v654 = vpack.c.bf16 %v637, %v634
        %v655 = vpack.c.bf16 %v645, %v642
        %v664 = vunpack.c.l.b16 %v648
        %v665 = vunpack.c.h.b16 %v648
        %v666 = vunpack.c.l.b16 %v649
        %v667 = vunpack.c.h.b16 %v649
        %v668 = vunpack.c.l.b16 %v650
        %v669 = vunpack.c.h.b16 %v650
        %v670 = vunpack.c.l.b16 %v651
        %v671 = vunpack.c.h.b16 %v651
        %v672 = vunpack.c.l.b16 %v652
        %v673 = vunpack.c.h.b16 %v652
        %v674 = vunpack.c.l.b16 %v653
        %v675 = vunpack.c.h.b16 %v653
        %v676 = vunpack.c.l.b16 %v654
        %v677 = vunpack.c.h.b16 %v654
        %v678 = vunpack.c.l.b16 %v655
        %v679 = vunpack.c.h.b16 %v655
        %v680 = vpack.c.b16 %v664, %v664
        %v681 = vpack.c.b16 %v665, %v665
        %v682 = vpack.c.b16 %v666, %v666
        %v683 = vpack.c.b16 %v667, %v667
        %v684 = vpack.c.b16 %v668, %v668
        %v685 = vpack.c.b16 %v669, %v669
        %v686 = vpack.c.b16 %v670, %v670
        %v687 = vpack.c.b16 %v671, %v671
        %v688 = vpack.c.b16 %v672, %v672
        %v689 = vpack.c.b16 %v673, %v673
        %v690 = vpack.c.b16 %v674, %v674
        %v691 = vpack.c.b16 %v675, %v675
        %v692 = vpack.c.b16 %v676, %v676
        %v693 = vpack.c.b16 %v677, %v677
        %v694 = vpack.c.b16 %v678, %v678
        %v695 = vpack.c.b16 %v679, %v679
        %s712 = sshra.s32 %s343, 3
        %s713 = sand.u32 %s343, 7
        %s714 = smul.addr %s712, 4
        %s715 = scalar_lea.vmem [#allocation2], %s714
        %716 = vst [vmem:[%s715] sm:$0xf] %v680
        %717 = vst [vmem:[%s715 + $0x4] sm:$0xf] %v681
        %718 = vst [vmem:[%s715 + $0x8] sm:$0xf] %v682
        %719 = vst [vmem:[%s715 + $0xc] sm:$0xf] %v683
        %720 = vst [vmem:[%s715 + $0x10] sm:$0xf] %v684
        %721 = vst [vmem:[%s715 + $0x14] sm:$0xf] %v685
        %722 = vst [vmem:[%s715 + $0x18] sm:$0xf] %v686
        %723 = vst [vmem:[%s715 + $0x1c] sm:$0xf] %v687
        %724 = vst [vmem:[%s715 + $0x20] sm:$0xf] %v688
        %725 = vst [vmem:[%s715 + $0x24] sm:$0xf] %v689
        %726 = vst [vmem:[%s715 + $0x28] sm:$0xf] %v690
        %727 = vst [vmem:[%s715 + $0x2c] sm:$0xf] %v691
        %728 = vst [vmem:[%s715 + $0x30] sm:$0xf] %v692
        %729 = vst [vmem:[%s715 + $0x34] sm:$0xf] %v693
        %730 = vst [vmem:[%s715 + $0x38] sm:$0xf] %v694
        %731 = vst [vmem:[%s715 + $0x3c] sm:$0xf] %v695
      $region52: #{gcn_forward.1} parent=47 // pred_fallthru
        _
      %p732 = scmp.eq.s32.totalorder %s25, 0
      // Predicated region
      $region53: #{gcn_forward.1} parent=47 // pred_check
        %p733 = pneg %p732
      $region54: #{gcn_forward.1} parent=47 // pred_check_branch
        %735 = sbr.rel (%p733) target = $region56
      $region55: #{gcn_forward.1} parent=47 // pred_region
        %736 = vst [vmem:[#allocation3] sm:$0xff] 0.0
        %737 = vst [vmem:[#allocation3 + $0x8] sm:$0xff] 0.0
        %738 = vst [vmem:[#allocation3 + $0x10] sm:$0xff] 0.0
        %739 = vst [vmem:[#allocation3 + $0x18] sm:$0xff] 0.0
        %740 = vst [vmem:[#allocation3 + $0x20] sm:$0xff] 0.0
        %741 = vst [vmem:[#allocation3 + $0x28] sm:$0xff] 0.0
        %742 = vst [vmem:[#allocation3 + $0x30] sm:$0xff] 0.0
        %743 = vst [vmem:[#allocation3 + $0x38] sm:$0xff] 0.0
        %744 = vst [vmem:[#allocation3 + $0x40] sm:$0xff] 0.0
        %745 = vst [vmem:[#allocation3 + $0x48] sm:$0xff] 0.0
        %746 = vst [vmem:[#allocation3 + $0x50] sm:$0xff] 0.0
        %747 = vst [vmem:[#allocation3 + $0x58] sm:$0xff] 0.0
        %748 = vst [vmem:[#allocation3 + $0x60] sm:$0xff] 0.0
        %749 = vst [vmem:[#allocation3 + $0x68] sm:$0xff] 0.0
        %750 = vst [vmem:[#allocation3 + $0x70] sm:$0xff] 0.0
        %751 = vst [vmem:[#allocation3 + $0x78] sm:$0xff] 0.0
      $region56: #{gcn_forward.1} parent=47 // pred_fallthru
        _
      %s752 = sshra.s32 %s343, 7
      %s753 = sand.u32 %s343, 127
      %s754 = sshra.s32 %s342, 3
      %s755 = sand.u32 %s342, 7
      %s756 = sadd.s32 %s752, %s754
      %s757 = smul.addr %s756, 4
      %s758 = scalar_lea.vmem %s0, %s757
      %v759 = vld [vmem:[%s758] sm:$0xf]
      %v760 = vld [vmem:[%s758 + $0x4] sm:$0xf]
      %v761 = vld [vmem:[%s758 + $0x8] sm:$0xf]
      %v762 = vld [vmem:[%s758 + $0xc] sm:$0xf]
      %v763 = vld [vmem:[%s758 + $0x10] sm:$0xf]
      %v764 = vld [vmem:[%s758 + $0x14] sm:$0xf]
      %v765 = vld [vmem:[%s758 + $0x18] sm:$0xf]
      %v766 = vld [vmem:[%s758 + $0x1c] sm:$0xf]
      %v767 = vld [vmem:[%s758 + $0x20] sm:$0xf]
      %v768 = vld [vmem:[%s758 + $0x24] sm:$0xf]
      %v769 = vld [vmem:[%s758 + $0x28] sm:$0xf]
      %v770 = vld [vmem:[%s758 + $0x2c] sm:$0xf]
      %v771 = vld [vmem:[%s758 + $0x30] sm:$0xf]
      %v772 = vld [vmem:[%s758 + $0x34] sm:$0xf]
      %v773 = vld [vmem:[%s758 + $0x38] sm:$0xf]
      %v774 = vld [vmem:[%s758 + $0x3c] sm:$0xf]
      %s775 = sshra.s32 %s343, 3
      %s776 = sand.u32 %s343, 7
      %s777 = smul.u32 %s23, 16
      %s778 = sadd.s32 %s775, %s777
      %s779 = smul.addr %s778, 4
      %s780 = scalar_lea.vmem [#allocation2], %s779
      %v781 = vld [vmem:[%s780] sm:$0xf]
      %v782 = vld [vmem:[%s780 + $0x4] sm:$0xf]
      %v783 = vld [vmem:[%s780 + $0x8] sm:$0xf]
      %v784 = vld [vmem:[%s780 + $0xc] sm:$0xf]
      %v785 = vld [vmem:[%s780 + $0x10] sm:$0xf]
      %v786 = vld [vmem:[%s780 + $0x14] sm:$0xf]
      %v787 = vld [vmem:[%s780 + $0x18] sm:$0xf]
      %v788 = vld [vmem:[%s780 + $0x1c] sm:$0xf]
      %v789 = vld [vmem:[%s780 + $0x20] sm:$0xf]
      %v790 = vld [vmem:[%s780 + $0x24] sm:$0xf]
      %v791 = vld [vmem:[%s780 + $0x28] sm:$0xf]
      %v792 = vld [vmem:[%s780 + $0x2c] sm:$0xf]
      %v793 = vld [vmem:[%s780 + $0x30] sm:$0xf]
      %v794 = vld [vmem:[%s780 + $0x34] sm:$0xf]
      %v795 = vld [vmem:[%s780 + $0x38] sm:$0xf]
      %v796 = vld [vmem:[%s780 + $0x3c] sm:$0xf]
      %v797 = vld [vmem:[#allocation3] sm:$0xff]
      %v798 = vld [vmem:[#allocation3 + $0x8] sm:$0xff]
      %v799 = vld [vmem:[#allocation3 + $0x10] sm:$0xff]
      %v800 = vld [vmem:[#allocation3 + $0x18] sm:$0xff]
      %v801 = vld [vmem:[#allocation3 + $0x20] sm:$0xff]
      %v802 = vld [vmem:[#allocation3 + $0x28] sm:$0xff]
      %v803 = vld [vmem:[#allocation3 + $0x30] sm:$0xff]
      %v804 = vld [vmem:[#allocation3 + $0x38] sm:$0xff]
      %v805 = vld [vmem:[#allocation3 + $0x40] sm:$0xff]
      %v806 = vld [vmem:[#allocation3 + $0x48] sm:$0xff]
      %v807 = vld [vmem:[#allocation3 + $0x50] sm:$0xff]
      %v808 = vld [vmem:[#allocation3 + $0x58] sm:$0xff]
      %v809 = vld [vmem:[#allocation3 + $0x60] sm:$0xff]
      %v810 = vld [vmem:[#allocation3 + $0x68] sm:$0xff]
      %v811 = vld [vmem:[#allocation3 + $0x70] sm:$0xff]
      %v812 = vld [vmem:[#allocation3 + $0x78] sm:$0xff]
      %v829 = vunpack.c.l.b16 %v759
      %v830 = vunpack.c.l.b16 %v760
      %v831 = vunpack.c.l.b16 %v761
      %v832 = vunpack.c.l.b16 %v762
      %v833 = vunpack.c.l.b16 %v763
      %v834 = vunpack.c.l.b16 %v764
      %v835 = vunpack.c.l.b16 %v765
      %v836 = vunpack.c.l.b16 %v766
      %v837 = vunpack.c.l.b16 %v767
      %v838 = vunpack.c.l.b16 %v768
      %v839 = vunpack.c.l.b16 %v769
      %v840 = vunpack.c.l.b16 %v770
      %v841 = vunpack.c.l.b16 %v771
      %v842 = vunpack.c.l.b16 %v772
      %v843 = vunpack.c.l.b16 %v773
      %v844 = vunpack.c.l.b16 %v774
      %v845 = vpack.c.b16 %v830, %v829
      %v846 = vpack.c.b16 %v832, %v831
      %v847 = vpack.c.b16 %v834, %v833
      %v848 = vpack.c.b16 %v836, %v835
      %v849 = vpack.c.b16 %v838, %v837
      %v850 = vpack.c.b16 %v840, %v839
      %v851 = vpack.c.b16 %v842, %v841
      %v852 = vpack.c.b16 %v844, %v843
      %v877 = vunpack.c.l.b16 %v781
      %v878 = vunpack.c.l.b16 %v782
      %v879 = vunpack.c.l.b16 %v783
      %v880 = vunpack.c.l.b16 %v784
      %v881 = vunpack.c.l.b16 %v785
      %v882 = vunpack.c.l.b16 %v786
      %v883 = vunpack.c.l.b16 %v787
      %v884 = vunpack.c.l.b16 %v788
      %v885 = vunpack.c.l.b16 %v789
      %v886 = vunpack.c.l.b16 %v790
      %v887 = vunpack.c.l.b16 %v791
      %v888 = vunpack.c.l.b16 %v792
      %v889 = vunpack.c.l.b16 %v793
      %v890 = vunpack.c.l.b16 %v794
      %v891 = vunpack.c.l.b16 %v795
      %v892 = vunpack.c.l.b16 %v796
      %v893 = vpack.c.b16 %v878, %v877
      %v894 = vpack.c.b16 %v880, %v879
      %v895 = vpack.c.b16 %v882, %v881
      %v896 = vpack.c.b16 %v884, %v883
      %v897 = vpack.c.b16 %v886, %v885
      %v898 = vpack.c.b16 %v888, %v887
      %v899 = vpack.c.b16 %v890, %v889
      %v900 = vpack.c.b16 %v892, %v891
      %909 = vmatprep.subr.bf16.mxu0 0
      %910 = vmatpush1.bf16.msra.mxu0 %v900
      %911 = vmatprep.subr.bf16.mxu0 0
      %912 = vmatpush1.bf16.msra.mxu0 %v899
      %913 = vmatprep.subr.bf16.mxu0 0
      %914 = vmatpush1.bf16.msra.mxu0 %v898
      %915 = vmatprep.subr.bf16.mxu0 0
      %916 = vmatpush1.bf16.msra.mxu0 %v897
      %917 = vmatprep.subr.bf16.mxu0 0
      %918 = vmatpush1.bf16.msra.mxu0 %v896
      %919 = vmatprep.subr.bf16.mxu0 0
      %920 = vmatpush1.bf16.msra.mxu0 %v895
      %921 = vmatprep.subr.bf16.mxu0 0
      %922 = vmatpush1.bf16.msra.mxu0 %v894
      %923 = vmatprep.subr.bf16.mxu0 0
      %924 = vmatpush1.bf16.msra.mxu0 %v893
      %925 = vmatprep.subr.bf16.mxu0 0
      %926 = vmatpush2.bf16.msra.mxu0 0
      %927 = vmatprep.subr.bf16.mxu0 0
      %928 = vmatpush2.bf16.msra.mxu0 0
      %929 = vmatprep.subr.bf16.mxu0 0
      %930 = vmatpush2.bf16.msra.mxu0 0
      %931 = vmatprep.subr.bf16.mxu0 0
      %932 = vmatpush2.bf16.msra.mxu0 0
      %933 = vmatprep.subr.bf16.mxu0 0
      %934 = vmatpush2.bf16.msra.mxu0 0
      %935 = vmatprep.subr.bf16.mxu0 0
      %936 = vmatpush2.bf16.msra.mxu0 0
      %937 = vmatprep.subr.bf16.mxu0 0
      %938 = vmatpush2.bf16.msra.mxu0 0
      %939 = vmatprep.subr.bf16.mxu0 0
      %940 = vmatpush2.bf16.msra.mxu0 0
      %941 = vmatprep.mubr.bf16.mxu0 0
      %942 = vmatmul.mubr.bf16.gmra.mxu0 %v845
      %v943 = vpop.f32.mrf.mxu0
      %v944 = vadd.f32 0.0, %v943
      %v945 = vpop.f32.mrf.mxu0
      %v946 = vpop.f32.mrf.mxu0
      %v947 = vadd.f32 0.0, %v946
      %v948 = vpop.f32.mrf.mxu0
      %949 = vmatprep.mubr.bf16.mxu0 0
      %950 = vmatmul.mubr.bf16.gmra.mxu0 %v846
      %v951 = vpop.f32.mrf.mxu0
      %v952 = vadd.f32 0.0, %v951
      %v953 = vpop.f32.mrf.mxu0
      %v954 = vpop.f32.mrf.mxu0
      %v955 = vadd.f32 0.0, %v954
      %v956 = vpop.f32.mrf.mxu0
      %957 = vmatprep.mubr.bf16.mxu0 0
      %958 = vmatmul.mubr.bf16.gmra.mxu0 %v847
      %v959 = vpop.f32.mrf.mxu0
      %v960 = vadd.f32 0.0, %v959
      %v961 = vpop.f32.mrf.mxu0
      %v962 = vpop.f32.mrf.mxu0
      %v963 = vadd.f32 0.0, %v962
      %v964 = vpop.f32.mrf.mxu0
      %965 = vmatprep.mubr.bf16.mxu0 0
      %966 = vmatmul.mubr.bf16.gmra.mxu0 %v848
      %v967 = vpop.f32.mrf.mxu0
      %v968 = vadd.f32 0.0, %v967
      %v969 = vpop.f32.mrf.mxu0
      %v970 = vpop.f32.mrf.mxu0
      %v971 = vadd.f32 0.0, %v970
      %v972 = vpop.f32.mrf.mxu0
      %973 = vmatprep.mubr.bf16.mxu0 0
      %974 = vmatmul.mubr.bf16.gmra.mxu0 %v849
      %v975 = vpop.f32.mrf.mxu0
      %v976 = vadd.f32 0.0, %v975
      %v977 = vpop.f32.mrf.mxu0
      %v978 = vpop.f32.mrf.mxu0
      %v979 = vadd.f32 0.0, %v978
      %v980 = vpop.f32.mrf.mxu0
      %981 = vmatprep.mubr.bf16.mxu0 0
      %982 = vmatmul.mubr.bf16.gmra.mxu0 %v850
      %v983 = vpop.f32.mrf.mxu0
      %v984 = vadd.f32 0.0, %v983
      %v985 = vpop.f32.mrf.mxu0
      %v986 = vpop.f32.mrf.mxu0
      %v987 = vadd.f32 0.0, %v986
      %v988 = vpop.f32.mrf.mxu0
      %989 = vmatprep.mubr.bf16.mxu0 0
      %990 = vmatmul.mubr.bf16.gmra.mxu0 %v851
      %v991 = vpop.f32.mrf.mxu0
      %v992 = vadd.f32 0.0, %v991
      %v993 = vpop.f32.mrf.mxu0
      %v994 = vpop.f32.mrf.mxu0
      %v995 = vadd.f32 0.0, %v994
      %v996 = vpop.f32.mrf.mxu0
      %997 = vmatprep.mubr.bf16.mxu0 0
      %998 = vmatmul.mubr.bf16.gmra.mxu0 %v852
      %v999 = vpop.f32.mrf.mxu0
      %v1000 = vadd.f32 0.0, %v999
      %v1001 = vpop.f32.mrf.mxu0
      %v1002 = vpop.f32.mrf.mxu0
      %v1003 = vadd.f32 0.0, %v1002
      %v1004 = vpop.f32.mrf.mxu0
      %1005 = vdwg.mxu0
      %v1006 = vadd.f32 %v797, %v944
      %v1007 = vadd.f32 %v798, %v947
      %v1008 = vadd.f32 %v799, %v952
      %v1009 = vadd.f32 %v800, %v955
      %v1010 = vadd.f32 %v801, %v960
      %v1011 = vadd.f32 %v802, %v963
      %v1012 = vadd.f32 %v803, %v968
      %v1013 = vadd.f32 %v804, %v971
      %v1014 = vadd.f32 %v805, %v976
      %v1015 = vadd.f32 %v806, %v979
      %v1016 = vadd.f32 %v807, %v984
      %v1017 = vadd.f32 %v808, %v987
      %v1018 = vadd.f32 %v809, %v992
      %v1019 = vadd.f32 %v810, %v995
      %v1020 = vadd.f32 %v811, %v1000
      %v1021 = vadd.f32 %v812, %v1003
      %1022 = vst [vmem:[#allocation3] sm:$0xff] %v1006
      %1023 = vst [vmem:[#allocation3 + $0x8] sm:$0xff] %v1007
      %1024 = vst [vmem:[#allocation3 + $0x10] sm:$0xff] %v1008
      %1025 = vst [vmem:[#allocation3 + $0x18] sm:$0xff] %v1009
      %1026 = vst [vmem:[#allocation3 + $0x20] sm:$0xff] %v1010
      %1027 = vst [vmem:[#allocation3 + $0x28] sm:$0xff] %v1011
      %1028 = vst [vmem:[#allocation3 + $0x30] sm:$0xff] %v1012
      %1029 = vst [vmem:[#allocation3 + $0x38] sm:$0xff] %v1013
      %1030 = vst [vmem:[#allocation3 + $0x40] sm:$0xff] %v1014
      %1031 = vst [vmem:[#allocation3 + $0x48] sm:$0xff] %v1015
      %1032 = vst [vmem:[#allocation3 + $0x50] sm:$0xff] %v1016
      %1033 = vst [vmem:[#allocation3 + $0x58] sm:$0xff] %v1017
      %1034 = vst [vmem:[#allocation3 + $0x60] sm:$0xff] %v1018
      %1035 = vst [vmem:[#allocation3 + $0x68] sm:$0xff] %v1019
      %1036 = vst [vmem:[#allocation3 + $0x70] sm:$0xff] %v1020
      %1037 = vst [vmem:[#allocation3 + $0x78] sm:$0xff] %v1021
      // Predicated region
      $region57: #{gcn_forward.1} parent=47 // pred_check
        %p1038 = pneg %p732
      $region58: #{gcn_forward.1} parent=47 // pred_check_branch
        %1040 = sbr.rel (%p1038) target = $region60
      $region59: #{gcn_forward.1} parent=47 // pred_region
        %s1041 = scalar_lea.vmem %s6, %s342
        %v1042 = vld [vmem:[%s1041] sm:$0xff]
        %v1043 = vld [vmem:[%s1041 + $0x8] sm:$0xff]
        %v1044 = vld [vmem:[%s1041 + $0x10] sm:$0xff]
        %v1045 = vld [vmem:[%s1041 + $0x18] sm:$0xff]
        %v1046 = vld [vmem:[%s1041 + $0x20] sm:$0xff]
        %v1047 = vld [vmem:[%s1041 + $0x28] sm:$0xff]
        %v1048 = vld [vmem:[%s1041 + $0x30] sm:$0xff]
        %v1049 = vld [vmem:[%s1041 + $0x38] sm:$0xff]
        %v1050 = vld [vmem:[%s1041 + $0x40] sm:$0xff]
        %v1051 = vld [vmem:[%s1041 + $0x48] sm:$0xff]
        %v1052 = vld [vmem:[%s1041 + $0x50] sm:$0xff]
        %v1053 = vld [vmem:[%s1041 + $0x58] sm:$0xff]
        %v1054 = vld [vmem:[%s1041 + $0x60] sm:$0xff]
        %v1055 = vld [vmem:[%s1041 + $0x68] sm:$0xff]
        %v1056 = vld [vmem:[%s1041 + $0x70] sm:$0xff]
        %v1057 = vld [vmem:[%s1041 + $0x78] sm:$0xff]
        %v1058 = vld [vmem:[#allocation3] sm:$0xff]
        %v1059 = vld [vmem:[#allocation3 + $0x8] sm:$0xff]
        %v1060 = vld [vmem:[#allocation3 + $0x10] sm:$0xff]
        %v1061 = vld [vmem:[#allocation3 + $0x18] sm:$0xff]
        %v1062 = vld [vmem:[#allocation3 + $0x20] sm:$0xff]
        %v1063 = vld [vmem:[#allocation3 + $0x28] sm:$0xff]
        %v1064 = vld [vmem:[#allocation3 + $0x30] sm:$0xff]
        %v1065 = vld [vmem:[#allocation3 + $0x38] sm:$0xff]
        %v1066 = vld [vmem:[#allocation3 + $0x40] sm:$0xff]
        %v1067 = vld [vmem:[#allocation3 + $0x48] sm:$0xff]
        %v1068 = vld [vmem:[#allocation3 + $0x50] sm:$0xff]
        %v1069 = vld [vmem:[#allocation3 + $0x58] sm:$0xff]
        %v1070 = vld [vmem:[#allocation3 + $0x60] sm:$0xff]
        %v1071 = vld [vmem:[#allocation3 + $0x68] sm:$0xff]
        %v1072 = vld [vmem:[#allocation3 + $0x70] sm:$0xff]
        %v1073 = vld [vmem:[#allocation3 + $0x78] sm:$0xff]
        %1075 = vset.pattern.permute.xlu0 0
        %1076 = vperm.xlu0 %1075, %v1042
        %v1077 = vpop.permute.xlu0 %1076
        %1080 = vset.pattern.permute.xlu0 0
        %1081 = vperm.xlu0 %1080, %v1043
        %v1082 = vpop.permute.xlu0 %1081
        %1085 = vset.pattern.permute.xlu0 0
        %1086 = vperm.xlu0 %1085, %v1044
        %v1087 = vpop.permute.xlu0 %1086
        %1090 = vset.pattern.permute.xlu0 0
        %1091 = vperm.xlu0 %1090, %v1045
        %v1092 = vpop.permute.xlu0 %1091
        %1095 = vset.pattern.permute.xlu0 0
        %1096 = vperm.xlu0 %1095, %v1046
        %v1097 = vpop.permute.xlu0 %1096
        %1100 = vset.pattern.permute.xlu0 0
        %1101 = vperm.xlu0 %1100, %v1047
        %v1102 = vpop.permute.xlu0 %1101
        %1105 = vset.pattern.permute.xlu0 0
        %1106 = vperm.xlu0 %1105, %v1048
        %v1107 = vpop.permute.xlu0 %1106
        %1110 = vset.pattern.permute.xlu0 0
        %1111 = vperm.xlu0 %1110, %v1049
        %v1112 = vpop.permute.xlu0 %1111
        %1115 = vset.pattern.permute.xlu0 0
        %1116 = vperm.xlu0 %1115, %v1050
        %v1117 = vpop.permute.xlu0 %1116
        %1120 = vset.pattern.permute.xlu0 0
        %1121 = vperm.xlu0 %1120, %v1051
        %v1122 = vpop.permute.xlu0 %1121
        %1125 = vset.pattern.permute.xlu0 0
        %1126 = vperm.xlu0 %1125, %v1052
        %v1127 = vpop.permute.xlu0 %1126
        %1130 = vset.pattern.permute.xlu0 0
        %1131 = vperm.xlu0 %1130, %v1053
        %v1132 = vpop.permute.xlu0 %1131
        %1135 = vset.pattern.permute.xlu0 0
        %1136 = vperm.xlu0 %1135, %v1054
        %v1137 = vpop.permute.xlu0 %1136
        %1140 = vset.pattern.permute.xlu0 0
        %1141 = vperm.xlu0 %1140, %v1055
        %v1142 = vpop.permute.xlu0 %1141
        %1145 = vset.pattern.permute.xlu0 0
        %1146 = vperm.xlu0 %1145, %v1056
        %v1147 = vpop.permute.xlu0 %1146
        %1150 = vset.pattern.permute.xlu0 0
        %1151 = vperm.xlu0 %1150, %v1057
        %v1152 = vpop.permute.xlu0 %1151
        %v1154 = vmul.f32 %v1058, %v1077
        %v1155 = vmul.f32 %v1059, %v1082
        %v1156 = vmul.f32 %v1060, %v1087
        %v1157 = vmul.f32 %v1061, %v1092
        %v1158 = vmul.f32 %v1062, %v1097
        %v1159 = vmul.f32 %v1063, %v1102
        %v1160 = vmul.f32 %v1064, %v1107
        %v1161 = vmul.f32 %v1065, %v1112
        %v1162 = vmul.f32 %v1066, %v1117
        %v1163 = vmul.f32 %v1067, %v1122
        %v1164 = vmul.f32 %v1068, %v1127
        %v1165 = vmul.f32 %v1069, %v1132
        %v1166 = vmul.f32 %v1070, %v1137
        %v1167 = vmul.f32 %v1071, %v1142
        %v1168 = vmul.f32 %v1072, %v1147
        %v1169 = vmul.f32 %v1073, %v1152
        // Predicated region
        $region61: #{gcn_forward.1} parent=59 // pred_check
          %p1170 = pneg %p344
        $region62: #{gcn_forward.1} parent=59 // pred_check_branch
          %1172 = sbr.rel (%p1170) target = $region64
        $region63: #{gcn_forward.1} parent=59 // pred_region
          %v1173 = vld [vmem:[%s3] sm:$0x1]
          %v1175 = vlaneseq
          %v1176 = vshrl.u32 %v1175, 7
          %v1177 = vsub.s32 0, %v1176
          %v1178 = vrot.slane %v1173, %v1177
          %v1180 = vadd.f32 %v1154, %v1178
          %v1181 = vadd.f32 %v1155, %v1178
          %v1182 = vadd.f32 %v1156, %v1178
          %v1183 = vadd.f32 %v1157, %v1178
          %v1184 = vadd.f32 %v1158, %v1178
          %v1185 = vadd.f32 %v1159, %v1178
          %v1186 = vadd.f32 %v1160, %v1178
          %v1187 = vadd.f32 %v1161, %v1178
          %v1188 = vadd.f32 %v1162, %v1178
          %v1189 = vadd.f32 %v1163, %v1178
          %v1190 = vadd.f32 %v1164, %v1178
          %v1191 = vadd.f32 %v1165, %v1178
          %v1192 = vadd.f32 %v1166, %v1178
          %v1193 = vadd.f32 %v1167, %v1178
          %v1194 = vadd.f32 %v1168, %v1178
          %v1195 = vadd.f32 %v1169, %v1178
          %v1196 = vmax.f32 %v1180, 0.0
          %v1197 = vmax.f32 %v1181, 0.0
          %v1198 = vmax.f32 %v1182, 0.0
          %v1199 = vmax.f32 %v1183, 0.0
          %v1200 = vmax.f32 %v1184, 0.0
          %v1201 = vmax.f32 %v1185, 0.0
          %v1202 = vmax.f32 %v1186, 0.0
          %v1203 = vmax.f32 %v1187, 0.0
          %v1204 = vmax.f32 %v1188, 0.0
          %v1205 = vmax.f32 %v1189, 0.0
          %v1206 = vmax.f32 %v1190, 0.0
          %v1207 = vmax.f32 %v1191, 0.0
          %v1208 = vmax.f32 %v1192, 0.0
          %v1209 = vmax.f32 %v1193, 0.0
          %v1210 = vmax.f32 %v1194, 0.0
          %v1211 = vmax.f32 %v1195, 0.0
          %v1212 = vmul.f32 %v1196, %v1077
          %v1213 = vmul.f32 %v1197, %v1082
          %v1214 = vmul.f32 %v1198, %v1087
          %v1215 = vmul.f32 %v1199, %v1092
          %v1216 = vmul.f32 %v1200, %v1097
          %v1217 = vmul.f32 %v1201, %v1102
          %v1218 = vmul.f32 %v1202, %v1107
          %v1219 = vmul.f32 %v1203, %v1112
          %v1220 = vmul.f32 %v1204, %v1117
          %v1221 = vmul.f32 %v1205, %v1122
          %v1222 = vmul.f32 %v1206, %v1127
          %v1223 = vmul.f32 %v1207, %v1132
          %v1224 = vmul.f32 %v1208, %v1137
          %v1225 = vmul.f32 %v1209, %v1142
          %v1226 = vmul.f32 %v1210, %v1147
          %v1227 = vmul.f32 %v1211, %v1152
          %v1228 = vpack.c.bf16 %v1213, %v1212
          %v1229 = vpack.c.bf16 %v1215, %v1214
          %v1230 = vpack.c.bf16 %v1217, %v1216
          %v1231 = vpack.c.bf16 %v1219, %v1218
          %v1232 = vpack.c.bf16 %v1221, %v1220
          %v1233 = vpack.c.bf16 %v1223, %v1222
          %v1234 = vpack.c.bf16 %v1225, %v1224
          %v1235 = vpack.c.bf16 %v1227, %v1226
          %v1236 = vld [vmem:[%s4] sm:$0xf]
          %v1237 = vld [vmem:[%s4 + $0x4] sm:$0xf]
          %v1238 = vld [vmem:[%s4 + $0x8] sm:$0xf]
          %v1239 = vld [vmem:[%s4 + $0xc] sm:$0xf]
          %v1240 = vld [vmem:[%s4 + $0x10] sm:$0xf]
          %v1241 = vld [vmem:[%s4 + $0x14] sm:$0xf]
          %v1242 = vld [vmem:[%s4 + $0x18] sm:$0xf]
          %v1243 = vld [vmem:[%s4 + $0x1c] sm:$0xf]
          %v1244 = vld [vmem:[%s4 + $0x20] sm:$0xf]
          %v1245 = vld [vmem:[%s4 + $0x24] sm:$0xf]
          %v1246 = vld [vmem:[%s4 + $0x28] sm:$0xf]
          %v1247 = vld [vmem:[%s4 + $0x2c] sm:$0xf]
          %v1248 = vld [vmem:[%s4 + $0x30] sm:$0xf]
          %v1249 = vld [vmem:[%s4 + $0x34] sm:$0xf]
          %v1250 = vld [vmem:[%s4 + $0x38] sm:$0xf]
          %v1251 = vld [vmem:[%s4 + $0x3c] sm:$0xf]
          %v1268 = vunpack.c.l.b16 %v1236
          %v1269 = vunpack.c.l.b16 %v1237
          %v1270 = vunpack.c.l.b16 %v1238
          %v1271 = vunpack.c.l.b16 %v1239
          %v1272 = vunpack.c.l.b16 %v1240
          %v1273 = vunpack.c.l.b16 %v1241
          %v1274 = vunpack.c.l.b16 %v1242
          %v1275 = vunpack.c.l.b16 %v1243
          %v1276 = vunpack.c.l.b16 %v1244
          %v1277 = vunpack.c.l.b16 %v1245
          %v1278 = vunpack.c.l.b16 %v1246
          %v1279 = vunpack.c.l.b16 %v1247
          %v1280 = vunpack.c.l.b16 %v1248
          %v1281 = vunpack.c.l.b16 %v1249
          %v1282 = vunpack.c.l.b16 %v1250
          %v1283 = vunpack.c.l.b16 %v1251
          %v1284 = vpack.c.b16 %v1269, %v1268
          %v1285 = vpack.c.b16 %v1271, %v1270
          %v1286 = vpack.c.b16 %v1273, %v1272
          %v1287 = vpack.c.b16 %v1275, %v1274
          %v1288 = vpack.c.b16 %v1277, %v1276
          %v1289 = vpack.c.b16 %v1279, %v1278
          %v1290 = vpack.c.b16 %v1281, %v1280
          %v1291 = vpack.c.b16 %v1283, %v1282
          %1300 = vmatprep.subr.bf16.mxu0 0
          %1301 = vmatpush1.bf16.msra.mxu0 %v1291
          %1302 = vmatprep.subr.bf16.mxu0 0
          %1303 = vmatpush1.bf16.msra.mxu0 %v1290
          %1304 = vmatprep.subr.bf16.mxu0 0
          %1305 = vmatpush1.bf16.msra.mxu0 %v1289
          %1306 = vmatprep.subr.bf16.mxu0 0
          %1307 = vmatpush1.bf16.msra.mxu0 %v1288
          %1308 = vmatprep.subr.bf16.mxu0 0
          %1309 = vmatpush1.bf16.msra.mxu0 %v1287
          %1310 = vmatprep.subr.bf16.mxu0 0
          %1311 = vmatpush1.bf16.msra.mxu0 %v1286
          %1312 = vmatprep.subr.bf16.mxu0 0
          %1313 = vmatpush1.bf16.msra.mxu0 %v1285
          %1314 = vmatprep.subr.bf16.mxu0 0
          %1315 = vmatpush1.bf16.msra.mxu0 %v1284
          %1316 = vmatprep.subr.bf16.mxu0 0
          %1317 = vmatpush2.bf16.msra.mxu0 0
          %1318 = vmatprep.subr.bf16.mxu0 0
          %1319 = vmatpush2.bf16.msra.mxu0 0
          %1320 = vmatprep.subr.bf16.mxu0 0
          %1321 = vmatpush2.bf16.msra.mxu0 0
          %1322 = vmatprep.subr.bf16.mxu0 0
          %1323 = vmatpush2.bf16.msra.mxu0 0
          %1324 = vmatprep.subr.bf16.mxu0 0
          %1325 = vmatpush2.bf16.msra.mxu0 0
          %1326 = vmatprep.subr.bf16.mxu0 0
          %1327 = vmatpush2.bf16.msra.mxu0 0
          %1328 = vmatprep.subr.bf16.mxu0 0
          %1329 = vmatpush2.bf16.msra.mxu0 0
          %1330 = vmatprep.subr.bf16.mxu0 0
          %1331 = vmatpush2.bf16.msra.mxu0 0
          %1332 = vmatprep.mubr.bf16.mxu0 0
          %1333 = vmatmul.mubr.bf16.gmra.mxu0 %v1228
          %v1334 = vpop.f32.mrf.mxu0
          %v1335 = vadd.f32 0.0, %v1334
          %v1336 = vpop.f32.mrf.mxu0
          %v1337 = vpop.f32.mrf.mxu0
          %v1338 = vadd.f32 0.0, %v1337
          %v1339 = vpop.f32.mrf.mxu0
          %1340 = vmatprep.mubr.bf16.mxu0 0
          %1341 = vmatmul.mubr.bf16.gmra.mxu0 %v1229
          %v1342 = vpop.f32.mrf.mxu0
          %v1343 = vadd.f32 0.0, %v1342
          %v1344 = vpop.f32.mrf.mxu0
          %v1345 = vpop.f32.mrf.mxu0
          %v1346 = vadd.f32 0.0, %v1345
          %v1347 = vpop.f32.mrf.mxu0
          %1348 = vmatprep.mubr.bf16.mxu0 0
          %1349 = vmatmul.mubr.bf16.gmra.mxu0 %v1230
          %v1350 = vpop.f32.mrf.mxu0
          %v1351 = vadd.f32 0.0, %v1350
          %v1352 = vpop.f32.mrf.mxu0
          %v1353 = vpop.f32.mrf.mxu0
          %v1354 = vadd.f32 0.0, %v1353
          %v1355 = vpop.f32.mrf.mxu0
          %1356 = vmatprep.mubr.bf16.mxu0 0
          %1357 = vmatmul.mubr.bf16.gmra.mxu0 %v1231
          %v1358 = vpop.f32.mrf.mxu0
          %v1359 = vadd.f32 0.0, %v1358
          %v1360 = vpop.f32.mrf.mxu0
          %v1361 = vpop.f32.mrf.mxu0
          %v1362 = vadd.f32 0.0, %v1361
          %v1363 = vpop.f32.mrf.mxu0
          %1364 = vmatprep.mubr.bf16.mxu0 0
          %1365 = vmatmul.mubr.bf16.gmra.mxu0 %v1232
          %v1366 = vpop.f32.mrf.mxu0
          %v1367 = vadd.f32 0.0, %v1366
          %v1368 = vpop.f32.mrf.mxu0
          %v1369 = vpop.f32.mrf.mxu0
          %v1370 = vadd.f32 0.0, %v1369
          %v1371 = vpop.f32.mrf.mxu0
          %1372 = vmatprep.mubr.bf16.mxu0 0
          %1373 = vmatmul.mubr.bf16.gmra.mxu0 %v1233
          %v1374 = vpop.f32.mrf.mxu0
          %v1375 = vadd.f32 0.0, %v1374
          %v1376 = vpop.f32.mrf.mxu0
          %v1377 = vpop.f32.mrf.mxu0
          %v1378 = vadd.f32 0.0, %v1377
          %v1379 = vpop.f32.mrf.mxu0
          %1380 = vmatprep.mubr.bf16.mxu0 0
          %1381 = vmatmul.mubr.bf16.gmra.mxu0 %v1234
          %v1382 = vpop.f32.mrf.mxu0
          %v1383 = vadd.f32 0.0, %v1382
          %v1384 = vpop.f32.mrf.mxu0
          %v1385 = vpop.f32.mrf.mxu0
          %v1386 = vadd.f32 0.0, %v1385
          %v1387 = vpop.f32.mrf.mxu0
          %1388 = vmatprep.mubr.bf16.mxu0 0
          %1389 = vmatmul.mubr.bf16.gmra.mxu0 %v1235
          %v1390 = vpop.f32.mrf.mxu0
          %v1391 = vadd.f32 0.0, %v1390
          %v1392 = vpop.f32.mrf.mxu0
          %v1393 = vpop.f32.mrf.mxu0
          %v1394 = vadd.f32 0.0, %v1393
          %v1395 = vpop.f32.mrf.mxu0
          %1396 = vdwg.mxu0
          %v1397 = vpack.c.bf16 %v1338, %v1335
          %v1398 = vpack.c.bf16 %v1346, %v1343
          %v1399 = vpack.c.bf16 %v1354, %v1351
          %v1400 = vpack.c.bf16 %v1362, %v1359
          %v1401 = vpack.c.bf16 %v1370, %v1367
          %v1402 = vpack.c.bf16 %v1378, %v1375
          %v1403 = vpack.c.bf16 %v1386, %v1383
          %v1404 = vpack.c.bf16 %v1394, %v1391
          %v1413 = vunpack.c.l.b16 %v1397
          %v1414 = vunpack.c.h.b16 %v1397
          %v1415 = vunpack.c.l.b16 %v1398
          %v1416 = vunpack.c.h.b16 %v1398
          %v1417 = vunpack.c.l.b16 %v1399
          %v1418 = vunpack.c.h.b16 %v1399
          %v1419 = vunpack.c.l.b16 %v1400
          %v1420 = vunpack.c.h.b16 %v1400
          %v1421 = vunpack.c.l.b16 %v1401
          %v1422 = vunpack.c.h.b16 %v1401
          %v1423 = vunpack.c.l.b16 %v1402
          %v1424 = vunpack.c.h.b16 %v1402
          %v1425 = vunpack.c.l.b16 %v1403
          %v1426 = vunpack.c.h.b16 %v1403
          %v1427 = vunpack.c.l.b16 %v1404
          %v1428 = vunpack.c.h.b16 %v1404
          %v1429 = vpack.c.b16 %v1413, %v1413
          %v1430 = vpack.c.b16 %v1414, %v1414
          %v1431 = vpack.c.b16 %v1415, %v1415
          %v1432 = vpack.c.b16 %v1416, %v1416
          %v1433 = vpack.c.b16 %v1417, %v1417
          %v1434 = vpack.c.b16 %v1418, %v1418
          %v1435 = vpack.c.b16 %v1419, %v1419
          %v1436 = vpack.c.b16 %v1420, %v1420
          %v1437 = vpack.c.b16 %v1421, %v1421
          %v1438 = vpack.c.b16 %v1422, %v1422
          %v1439 = vpack.c.b16 %v1423, %v1423
          %v1440 = vpack.c.b16 %v1424, %v1424
          %v1441 = vpack.c.b16 %v1425, %v1425
          %v1442 = vpack.c.b16 %v1426, %v1426
          %v1443 = vpack.c.b16 %v1427, %v1427
          %v1444 = vpack.c.b16 %v1428, %v1428
          %s1461 = sadd.s32 %s754, 16
          %s1462 = smul.addr %s1461, 4
          %s1463 = scalar_lea.vmem [#allocation2], %s1462
          %1464 = vst [vmem:[%s1463] sm:$0xf] %v1429
          %1465 = vst [vmem:[%s1463 + $0x4] sm:$0xf] %v1430
          %1466 = vst [vmem:[%s1463 + $0x8] sm:$0xf] %v1431
          %1467 = vst [vmem:[%s1463 + $0xc] sm:$0xf] %v1432
          %1468 = vst [vmem:[%s1463 + $0x10] sm:$0xf] %v1433
          %1469 = vst [vmem:[%s1463 + $0x14] sm:$0xf] %v1434
          %1470 = vst [vmem:[%s1463 + $0x18] sm:$0xf] %v1435
          %1471 = vst [vmem:[%s1463 + $0x1c] sm:$0xf] %v1436
          %1472 = vst [vmem:[%s1463 + $0x20] sm:$0xf] %v1437
          %1473 = vst [vmem:[%s1463 + $0x24] sm:$0xf] %v1438
          %1474 = vst [vmem:[%s1463 + $0x28] sm:$0xf] %v1439
          %1475 = vst [vmem:[%s1463 + $0x2c] sm:$0xf] %v1440
          %1476 = vst [vmem:[%s1463 + $0x30] sm:$0xf] %v1441
          %1477 = vst [vmem:[%s1463 + $0x34] sm:$0xf] %v1442
          %1478 = vst [vmem:[%s1463 + $0x38] sm:$0xf] %v1443
          %1479 = vst [vmem:[%s1463 + $0x3c] sm:$0xf] %v1444
        $region64: #{gcn_forward.1} parent=59 // pred_fallthru
          _
        %p1480 = scmp.eq.s32.totalorder %s23, 1
        // Predicated region
        $region65: #{gcn_forward.1} parent=59 // pred_check
          %p1481 = pneg %p1480
        $region66: #{gcn_forward.1} parent=59 // pred_check_branch
          %1483 = sbr.rel (%p1481) target = $region68
        $region67: #{gcn_forward.1} parent=59 // pred_region
          %v1484 = vld [vmem:[%s5] sm:$0x1]
          %v1486 = vlaneseq
          %v1487 = vshrl.u32 %v1486, 7
          %v1488 = vsub.s32 0, %v1487
          %v1489 = vrot.slane %v1484, %v1488
          %v1491 = vadd.f32 %v1154, %v1489
          %v1492 = vadd.f32 %v1155, %v1489
          %v1493 = vadd.f32 %v1156, %v1489
          %v1494 = vadd.f32 %v1157, %v1489
          %v1495 = vadd.f32 %v1158, %v1489
          %v1496 = vadd.f32 %v1159, %v1489
          %v1497 = vadd.f32 %v1160, %v1489
          %v1498 = vadd.f32 %v1161, %v1489
          %v1499 = vadd.f32 %v1162, %v1489
          %v1500 = vadd.f32 %v1163, %v1489
          %v1501 = vadd.f32 %v1164, %v1489
          %v1502 = vadd.f32 %v1165, %v1489
          %v1503 = vadd.f32 %v1166, %v1489
          %v1504 = vadd.f32 %v1167, %v1489
          %v1505 = vadd.f32 %v1168, %v1489
          %v1506 = vadd.f32 %v1169, %v1489
          %1507 = vst [vmem:[%s338] sm:$0xff] %v1491
          %1508 = vst [vmem:[%s338 + $0x8] sm:$0xff] %v1492
          %1509 = vst [vmem:[%s338 + $0x10] sm:$0xff] %v1493
          %1510 = vst [vmem:[%s338 + $0x18] sm:$0xff] %v1494
          %1511 = vst [vmem:[%s338 + $0x20] sm:$0xff] %v1495
          %1512 = vst [vmem:[%s338 + $0x28] sm:$0xff] %v1496
          %1513 = vst [vmem:[%s338 + $0x30] sm:$0xff] %v1497
          %1514 = vst [vmem:[%s338 + $0x38] sm:$0xff] %v1498
          %1515 = vst [vmem:[%s338 + $0x40] sm:$0xff] %v1499
          %1516 = vst [vmem:[%s338 + $0x48] sm:$0xff] %v1500
          %1517 = vst [vmem:[%s338 + $0x50] sm:$0xff] %v1501
          %1518 = vst [vmem:[%s338 + $0x58] sm:$0xff] %v1502
          %1519 = vst [vmem:[%s338 + $0x60] sm:$0xff] %v1503
          %1520 = vst [vmem:[%s338 + $0x68] sm:$0xff] %v1504
          %1521 = vst [vmem:[%s338 + $0x70] sm:$0xff] %v1505
          %1522 = vst [vmem:[%s338 + $0x78] sm:$0xff] %v1506
        $region68: #{gcn_forward.1} parent=59 // pred_fallthru
          _
      $region60: #{gcn_forward.1} parent=47 // pred_fallthru
        _
      %s1523 = smul.u32 %s23, %s24
      %s1524 = smul.u32 16, %s1523
      %p1525 = scmp.lt.s32.totalorder %s1524, 15
      %s1526 = scalar_select %p1525, %s1524, 15
      %s1527 = smul.addr %s1526, 8
      %s1528 = scalar_lea.vmem %s7, %s1527
      // Predicated region
      $region69: #{gcn_forward.1} parent=47 // pred_check
        %p1529 = pneg %p219
      $region70: #{gcn_forward.1} parent=47 // pred_check_branch
        %1531 = sbr.rel (%p1529) target = $region72
      $region71: #{gcn_forward.1} parent=47 // pred_region
        %s1532 = smul.u32 %s23, %s24
        %s1533 = smul.u32 16, %s1532
      $region72: #{gcn_forward.1} parent=47 // pred_fallthru
        _
    $region48: #{gcn_forward.1} parent=5 // pred_fallthru
      _
    %p1534 = scmp.le.s32.totalorder 2, %s13
    // Predicated region
    $region73: #{gcn_forward.1} parent=5 // pred_check
      %p1535 = pneg %p1534
    $region74: #{gcn_forward.1} parent=5 // pred_check_branch
      %1537 = sbr.rel (%p1535) target = $region76
    $region75: #{gcn_forward.1} parent=5 // pred_region
      %s1538 = ssub.s32 %s13, 2
      // Predicated region
      $region77: #{gcn_forward.1} parent=75 // pred_check
        %p1539 = pneg %p225
      $region78: #{gcn_forward.1} parent=75 // pred_check_branch
        %1541 = sbr.rel (%p1539) target = $region80
      $region79: #{gcn_forward.1} parent=75 // pred_region
        %s1542 = smul.u32 %s26, %s27
        %s1543 = smul.u32 16, %s1542
        %p1544 = scmp.lt.s32.totalorder %s1543, 15
        %s1545 = scalar_select %p1544, %s1543, 15
        %s1546 = smul.addr %s1545, 8
        %s1547 = scalar_lea.vmem %s7, %s1546
      $region80: #{gcn_forward.1} parent=75 // pred_fallthru
        _
    $region76: #{gcn_forward.1} parent=5 // pred_fallthru
      _
  $region6: #{gcn_forward.1} parent=0 // loop_footer
    %s17 = sadd.s32 1, %s13
  $region7: #{gcn_forward.1} parent=0 // loop_footer_branch
    %12 = sbr.rel target = $region3
  $region8: #{gcn_forward.1} parent=0 // loop_exit
    _

</llo_original>
